<compile_context>
chip_gen: v5e
topology: v5e:2x2
jax: 0.10.0
libtpu: 0.0.40
codegen_flags: <defaults>
</compile_context>

<pallas_src>
import jax
import jax.numpy as jnp
from jax import lax
from jax.experimental import pallas as pl
from jax.experimental.pallas import tpu as pltpu
import numpy as np

LANES = 128


def _round_up(x, m):
    return (x + m - 1) // m * m


# ----------------------------- Pallas kernels ------------------------------

def conv_relu_pool_kernel(p_ref, w_ref, b_ref, o_ref):
    """Fused conv (im2col matmul) + bias + ReLU + 2x2 max-pool for one row tile.

    p_ref : (4*tm, K) bf16  patch rows; rows [s*tm, (s+1)*tm) hold pool-window
            element s = dh*2+dw for the same tm pooled output positions.
    w_ref : (K, 128)  bf16  lane-padded conv weights (im2col layout).
    b_ref : (1, 128)  f32   lane-padded bias.
    o_ref : (tm, 128) bf16  lane-padded pooled output rows.
    """
    tm = o_ref.shape[0]
    # one MXU push for all four pool-window elements
    z = jnp.dot(p_ref[...], w_ref[...], preferred_element_type=jnp.float32)
    z = jnp.maximum(z + b_ref[...], 0.0)                     # bias + ReLU (VPU)
    # max over the 4 pool-window elements (ReLU-then-max == max-then-ReLU)
    m = jnp.maximum(jnp.maximum(z[0:tm], z[tm:2 * tm]),
                    jnp.maximum(z[2 * tm:3 * tm], z[3 * tm:4 * tm]))
    o_ref[...] = m.astype(o_ref.dtype)


def mlp_kernel(x_ref, w1_ref, b1_ref, w2_ref, b2_ref, o_ref):
    """fc1 + ReLU + fc2 (lane-padded to 128, bf16 operands, f32 accumulation)."""
    h = jnp.dot(x_ref[...], w1_ref[...], preferred_element_type=jnp.float32)
    h = jnp.maximum(h + b1_ref[...], 0.0)
    o_ref[...] = (jnp.dot(h.astype(jnp.bfloat16), w2_ref[...],
                          preferred_element_type=jnp.float32) + b2_ref[...])


# ----------------------------- pallas_call wrappers ------------------------

def conv_relu_pool(p_rows, w, b, tm, n_rows_padded):
    """p_rows: (grid*4*tm, K) bf16, rows grouped (tile, pool-phase, row)."""
    grid = n_rows_padded // tm
    k = p_rows.shape[1]
    return pl.pallas_call(
        conv_relu_pool_kernel,
        grid=(grid,),
        in_specs=[pl.BlockSpec((4 * tm, k), lambda i: (i, 0)),
                  pl.BlockSpec(w.shape, lambda i: (0, 0)),
                  pl.BlockSpec(b.shape, lambda i: (0, 0))],
        out_specs=pl.BlockSpec((tm, LANES), lambda i: (i, 0)),
        out_shape=jax.ShapeDtypeStruct((n_rows_padded, LANES), jnp.bfloat16),
        compiler_params=pltpu.CompilerParams(dimension_semantics=("parallel",)),
    )(p_rows, w, b)


def mlp(x, w1, b1, w2, b2):
    bp = x.shape[0]
    args = (x, w1, b1, w2, b2)
    return pl.pallas_call(
        mlp_kernel,
        grid=(1,),
        in_specs=[pl.BlockSpec(a.shape, lambda i: (0, 0)) for a in args],
        out_specs=pl.BlockSpec((bp, LANES), lambda i: (0, 0)),
        out_shape=jax.ShapeDtypeStruct((bp, LANES), jnp.float32),
        compiler_params=pltpu.CompilerParams(dimension_semantics=("parallel",)),
    )(*args)


# ----------------------------- host-side glue ------------------------------

def im2col(x_nhwc, ksize, out_h, out_w):
    """(B,H,W,C) -> (B,out_h,out_w,C*k*k), feature order (c, kh, kw)
    to match PyTorch's OIHW weight flatten."""
    b, _, _, c = x_nhwc.shape
    cols = [x_nhwc[:, ki:ki + out_h, kj:kj + out_w, :]
            for ki in range(ksize) for kj in range(ksize)]
    p = jnp.stack(cols, axis=-1)                       # (B, oh, ow, C, k*k)
    return p.reshape(b, out_h, out_w, c * ksize * ksize)


def pool_slab_rows(patches, tm):
    """(B, OH, OW, K) -> (grid*4*tm, Kpad) rows laid out (tile, phase, row)."""
    b, oh, ow, k = patches.shape
    ph, pw = oh // 2, ow // 2
    n = b * ph * pw
    # single reshape+transpose instead of 4 strided gathers
    s = patches.reshape(b, ph, 2, pw, 2, k).transpose(2, 4, 0, 1, 3, 5)
    s = s.reshape(4, n, k)                             # (phase, (b,ph,pw), K)
    n_pad = _round_up(n, tm)
    k_pad = _round_up(k, 16)
    s = jnp.pad(s, ((0, 0), (0, n_pad - n), (0, k_pad - k)))
    s = s.reshape(4, n_pad // tm, tm, k_pad).transpose(1, 0, 2, 3)
    return s.reshape((n_pad // tm) * 4 * tm, k_pad), n, n_pad


def net_forward(x, params):
    """x: (B, 1, 28, 28) float32 (NCHW, like PyTorch). Returns (B, 10) f32."""
    (w1, b1, w2, b2, wf1, bf1, wf2, bf2) = params
    bsz = x.shape[0]

    # conv1: pad=2 -> 28x28, relu + 2x2 pool -> (B,14,14,6)
    xp = jnp.pad(x, ((0, 0), (0, 0), (2, 2), (2, 2)))
    x_nhwc = jnp.transpose(xp, (0, 2, 3, 1)).astype(jnp.bfloat16)  # (B,32,32,1)
    patches1 = im2col(x_nhwc, 5, 28, 28)                           # (B,28,28,25)
    tm1 = min(256, _round_up(bsz * 14 * 14, 16))
    p1, n1, n1p = pool_slab_rows(patches1, tm1)
    h1 = conv_relu_pool(p1, w1, b1, tm1, n1p)                      # (n1p,128) bf16
    h1 = h1[:n1, :6].reshape(bsz, 14, 14, 6)                       # NHWC

    # conv2: valid -> 10x10, relu + 2x2 pool -> (B,5,5,16)
    patches2 = im2col(h1, 5, 10, 10)                               # (B,10,10,150)
    tm2 = min(256, _round_up(bsz * 5 * 5, 16))
    p2, n2, n2p = pool_slab_rows(patches2, tm2)
    h2 = conv_relu_pool(p2, w2, b2, tm2, n2p)                      # (n2p,128) bf16

    # flatten in (h, w, c) order (fc1 weights were permuted to match), pad,
    # then fused fc1+relu+fc2
    flat = h2[:n2, :16].reshape(bsz, 25 * 16)                      # (B,400) bf16
    bp = _round_up(bsz, 16)
    flat = jnp.pad(flat, ((0, bp - bsz), (0, 512 - 400)))
    out = mlp(flat, wf1, bf1, wf2, bf2)                            # (bp,128) f32
    return out[:bsz, :10]


# ----------------------------- reference (pure JAX) ------------------------

def reference_forward(x, torch_params):
    """Mirrors the kernel's bf16 quantization points, accumulates in f32."""
    cw1, cb1, cw2, cb2, fw1, fb1, fw2, fb2 = torch_params
    r = lambda a: a.astype(jnp.bfloat16).astype(jnp.float32)   # bf16 rounding
    dn = ("NCHW", "OIHW", "NCHW")
    hp = lax.Precision.HIGHEST
    y = lax.conv_general_dilated(r(x), r(cw1), (1, 1), ((2, 2), (2, 2)),
                                 dimension_numbers=dn, precision=hp)
    y = jnp.maximum(y + cb1[None, :, None, None], 0.0)
    y = lax.reduce_window(y, -jnp.inf, lax.max, (1, 1, 2, 2), (1, 1, 2, 2), "VALID")
    y = r(y)                                                   # kernel1 stores bf16
    y = lax.conv_general_dilated(y, r(cw2), (1, 1), ((0, 0), (0, 0)),
                                 dimension_numbers=dn, precision=hp)
    y = jnp.maximum(y + cb2[None, :, None, None], 0.0)
    y = lax.reduce_window(y, -jnp.inf, lax.max, (1, 1, 2, 2), (1, 1, 2, 2), "VALID")
    y = r(y).reshape(y.shape[0], -1)                           # kernel2 stores bf16
    y = jnp.maximum(jnp.dot(y, r(fw1).T, precision=hp) + fb1, 0.0)
    y = r(y)                                                   # mlp casts before fc2
    return jnp.dot(y, r(fw2).T, precision=hp) + fb2


# ----------------------------- main -----------------------------------------

def _pad2d(a, rows, cols):
    return jnp.pad(a, ((0, rows - a.shape[0]), (0, cols - a.shape[1])))


if __name__ == "__main__":
    key = jax.random.PRNGKey(0)
    ks = jax.random.split(key, 9)

    # deterministic synthetic parameters (PyTorch shapes)
    conv1_w = jax.random.normal(ks[0], (6, 1, 5, 5), jnp.float32) * 0.2
    conv1_b = jax.random.normal(ks[1], (6,), jnp.float32) * 0.1
    conv2_w = jax.random.normal(ks[2], (16, 6, 5, 5), jnp.float32) * 0.1
    conv2_b = jax.random.normal(ks[3], (16,), jnp.float32) * 0.1
    fc1_w = jax.random.normal(ks[4], (120, 400), jnp.float32) * 0.05
    fc1_b = jax.random.normal(ks[5], (120,), jnp.float32) * 0.1
    fc2_w = jax.random.normal(ks[6], (10, 120), jnp.float32) * 0.1
    fc2_b = jax.random.normal(ks[7], (10,), jnp.float32) * 0.1

    # kernel-layout parameters: bf16 weights, lane-padded to 128; f32 biases.
    # fc1 input features permuted from torch (c,h,w) order to kernel (h,w,c).
    fc1_perm = fc1_w.reshape(120, 16, 25).transpose(0, 2, 1).reshape(120, 400)
    kernel_params = (
        _pad2d(conv1_w.reshape(6, 25).T, 32, LANES).astype(jnp.bfloat16),
        _pad2d(conv1_b.reshape(1, 6), 1, LANES),
        _pad2d(conv2_w.reshape(16, 150).T, 160, LANES).astype(jnp.bfloat16),
        _pad2d(conv2_b.reshape(1, 16), 1, LANES),
        _pad2d(fc1_perm.T, 512, LANES).astype(jnp.bfloat16),
        _pad2d(fc1_b.reshape(1, 120), 1, LANES),
        _pad2d(fc2_w.T, LANES, LANES).astype(jnp.bfloat16),
        _pad2d(fc2_b.reshape(1, 10), 1, LANES),
    )
    torch_params = (conv1_w, conv1_b, conv2_w, conv2_b,
                    fc1_w, fc1_b, fc2_w, fc2_b)

    x = jax.random.normal(ks[8], (2, 1, 28, 28), jnp.float32)

    fwd = jax.jit(net_forward)
    out = jax.block_until_ready(fwd(x, kernel_params))

    ref = jax.block_until_ready(reference_forward(x, torch_params))
    assert out.shape == (2, 10), out.shape
    np.testing.assert_allclose(np.asarray(out), np.asarray(ref),
                               rtol=1e-2, atol=1e-2)

    print("KERNEL_OK")
</pallas_src>

<mosaic_0001>
module attributes {stable_mosaic.version = 11 : i64} {
  func.func @conv_relu_pool_kernel(%arg0: i32, %arg1: memref<1024x32xbf16, #tpu.memory_space<vmem>>, %arg2: memref<32x128xbf16, #tpu.memory_space<vmem>>, %arg3: memref<1x128xf32, #tpu.memory_space<vmem>>, %arg4: memref<256x128xbf16, #tpu.memory_space<vmem>>) attributes {dimension_semantics = [#tpu.dimension_semantics<parallel>], iteration_bounds = array<i64: 2>, scalar_prefetch = 0 : i64, scratch_operands = 0 : i64, tpu.core_type = #tpu.core_type<tc>, window_params = [{transform_indices = @transform_0, window_bounds = array<i64: 1024, 32>}, {pipeline_mode = #tpu.pipeline_mode<synchronous>, transform_indices = @transform_1, window_bounds = array<i64: 32, 128>}, {pipeline_mode = #tpu.pipeline_mode<synchronous>, transform_indices = @transform_2, window_bounds = array<i64: 1, 128>}, {transform_indices = @transform_3, window_bounds = array<i64: 256, 128>}]} {
    %c0 = arith.constant 0 : index
    %c0_0 = arith.constant 0 : index
    %0 = vector.load %arg1[%c0, %c0_0] : memref<1024x32xbf16, #tpu.memory_space<vmem>>, vector<1024x32xbf16>
    %c0_1 = arith.constant 0 : index
    %c0_2 = arith.constant 0 : index
    %1 = vector.load %arg2[%c0_1, %c0_2] : memref<32x128xbf16, #tpu.memory_space<vmem>>, vector<32x128xbf16>
    %cst = arith.constant dense<0.000000e+00> : vector<1024x128xf32>
    %2 = tpu.matmul %0, %1, %cst {dimension_numbers = #tpu.dot_dimension_numbers<[1], [0], [0], [1], [0, 0, 1, 1], [], []>} : vector<1024x32xbf16>, vector<32x128xbf16>, vector<1024x128xf32> -> vector<1024x128xf32>
    %c0_3 = arith.constant 0 : index
    %c0_4 = arith.constant 0 : index
    %3 = vector.load %arg3[%c0_3, %c0_4] : memref<1x128xf32, #tpu.memory_space<vmem>>, vector<1x128xf32>
    %4 = vector.broadcast %3 : vector<1x128xf32> to vector<1024x128xf32>
    %5 = arith.addf %2, %4 : vector<1024x128xf32>
    %cst_5 = arith.constant 0.000000e+00 : f32
    %6 = vector.broadcast %cst_5 : f32 to vector<1024x128xf32>
    %7 = arith.maximumf %5, %6 : vector<1024x128xf32>
    %8 = vector.extract_strided_slice %7 {offsets = [0, 0], sizes = [256, 128], strides = [1, 1]} : vector<1024x128xf32> to vector<256x128xf32>
    %9 = vector.extract_strided_slice %7 {offsets = [256, 0], sizes = [256, 128], strides = [1, 1]} : vector<1024x128xf32> to vector<256x128xf32>
    %10 = arith.maximumf %8, %9 : vector<256x128xf32>
    %11 = vector.extract_strided_slice %7 {offsets = [512, 0], sizes = [256, 128], strides = [1, 1]} : vector<1024x128xf32> to vector<256x128xf32>
    %12 = vector.extract_strided_slice %7 {offsets = [768, 0], sizes = [256, 128], strides = [1, 1]} : vector<1024x128xf32> to vector<256x128xf32>
    %13 = arith.maximumf %11, %12 : vector<256x128xf32>
    %14 = arith.maximumf %10, %13 : vector<256x128xf32>
    %15 = arith.truncf %14 : vector<256x128xf32> to vector<256x128xbf16>
    %c0_6 = arith.constant 0 : index
    %c0_7 = arith.constant 0 : index
    %16 = vector.load %arg4[%c0_6, %c0_7] : memref<256x128xbf16, #tpu.memory_space<vmem>>, vector<256x128xbf16>
    tpu.vector_store %arg4[%c0_6, %c0_7], %15 {strides = array<i32>} : memref<256x128xbf16, #tpu.memory_space<vmem>>, vector<256x128xbf16>,
    return
  }
  func.func @transform_0(%arg0: i32) -> (i32, i32) {
    %c0_i32 = arith.constant 0 : i32
    %c0_i32_0 = arith.constant 0 : i32
    return %arg0, %c0_i32 : i32, i32
  }
  func.func @transform_1(%arg0: i32) -> (i32, i32) {
    %c0_i32 = arith.constant 0 : i32
    %c0_i32_0 = arith.constant 0 : i32
    %c0_i32_1 = arith.constant 0 : i32
    return %c0_i32, %c0_i32_0 : i32, i32
  }
  func.func @transform_2(%arg0: i32) -> (i32, i32) {
    %c0_i32 = arith.constant 0 : i32
    %c0_i32_0 = arith.constant 0 : i32
    %c0_i32_1 = arith.constant 0 : i32
    return %c0_i32, %c0_i32_0 : i32, i32
  }
  func.func @transform_3(%arg0: i32) -> (i32, i32) {
    %c0_i32 = arith.constant 0 : i32
    %c0_i32_0 = arith.constant 0 : i32
    return %arg0, %c0_i32 : i32, i32
  }
}

module attributes {stable_mosaic.version = 11 : i64} {
  func.func @conv_relu_pool_kernel(%arg0: i32, %arg1: memref<256x160xbf16, #tpu.memory_space<vmem>>, %arg2: memref<160x128xbf16, #tpu.memory_space<vmem>>, %arg3: memref<1x128xf32, #tpu.memory_space<vmem>>, %arg4: memref<64x128xbf16, #tpu.memory_space<vmem>>) attributes {dimension_semantics = [#tpu.dimension_semantics<parallel>], iteration_bounds = array<i64: 1>, scalar_prefetch = 0 : i64, scratch_operands = 0 : i64, tpu.core_type = #tpu.core_type<tc>, window_params = [{transform_indices = @transform_0, window_bounds = array<i64: 256, 160>}, {pipeline_mode = #tpu.pipeline_mode<synchronous>, transform_indices = @transform_1, window_bounds = array<i64: 160, 128>}, {pipeline_mode = #tpu.pipeline_mode<synchronous>, transform_indices = @transform_2, window_bounds = array<i64: 1, 128>}, {transform_indices = @transform_3, window_bounds = array<i64: 64, 128>}]} {
    %c0 = arith.constant 0 : index
    %c0_0 = arith.constant 0 : index
    %0 = vector.load %arg1[%c0, %c0_0] : memref<256x160xbf16, #tpu.memory_space<vmem>>, vector<256x160xbf16>
    %c0_1 = arith.constant 0 : index
    %c0_2 = arith.constant 0 : index
    %1 = vector.load %arg2[%c0_1, %c0_2] : memref<160x128xbf16, #tpu.memory_space<vmem>>, vector<160x128xbf16>
    %cst = arith.constant dense<0.000000e+00> : vector<256x128xf32>
    %2 = tpu.matmul %0, %1, %cst {dimension_numbers = #tpu.dot_dimension_numbers<[1], [0], [0], [1], [0, 0, 1, 1], [], []>} : vector<256x160xbf16>, vector<160x128xbf16>, vector<256x128xf32> -> vector<256x128xf32>
    %c0_3 = arith.constant 0 : index
    %c0_4 = arith.constant 0 : index
    %3 = vector.load %arg3[%c0_3, %c0_4] : memref<1x128xf32, #tpu.memory_space<vmem>>, vector<1x128xf32>
    %4 = vector.broadcast %3 : vector<1x128xf32> to vector<256x128xf32>
    %5 = arith.addf %2, %4 : vector<256x128xf32>
    %cst_5 = arith.constant 0.000000e+00 : f32
    %6 = vector.broadcast %cst_5 : f32 to vector<256x128xf32>
    %7 = arith.maximumf %5, %6 : vector<256x128xf32>
    %8 = vector.extract_strided_slice %7 {offsets = [0, 0], sizes = [64, 128], strides = [1, 1]} : vector<256x128xf32> to vector<64x128xf32>
    %9 = vector.extract_strided_slice %7 {offsets = [64, 0], sizes = [64, 128], strides = [1, 1]} : vector<256x128xf32> to vector<64x128xf32>
    %10 = arith.maximumf %8, %9 : vector<64x128xf32>
    %11 = vector.extract_strided_slice %7 {offsets = [128, 0], sizes = [64, 128], strides = [1, 1]} : vector<256x128xf32> to vector<64x128xf32>
    %12 = vector.extract_strided_slice %7 {offsets = [192, 0], sizes = [64, 128], strides = [1, 1]} : vector<256x128xf32> to vector<64x128xf32>
    %13 = arith.maximumf %11, %12 : vector<64x128xf32>
    %14 = arith.maximumf %10, %13 : vector<64x128xf32>
    %15 = arith.truncf %14 : vector<64x128xf32> to vector<64x128xbf16>
    %c0_6 = arith.constant 0 : index
    %c0_7 = arith.constant 0 : index
    %16 = vector.load %arg4[%c0_6, %c0_7] : memref<64x128xbf16, #tpu.memory_space<vmem>>, vector<64x128xbf16>
    tpu.vector_store %arg4[%c0_6, %c0_7], %15 {strides = array<i32>} : memref<64x128xbf16, #tpu.memory_space<vmem>>, vector<64x128xbf16>,
    return
  }
  func.func @transform_0(%arg0: i32) -> (i32, i32) {
    %c0_i32 = arith.constant 0 : i32
    %c0_i32_0 = arith.constant 0 : i32
    return %arg0, %c0_i32 : i32, i32
  }
  func.func @transform_1(%arg0: i32) -> (i32, i32) {
    %c0_i32 = arith.constant 0 : i32
    %c0_i32_0 = arith.constant 0 : i32
    %c0_i32_1 = arith.constant 0 : i32
    return %c0_i32, %c0_i32_0 : i32, i32
  }
  func.func @transform_2(%arg0: i32) -> (i32, i32) {
    %c0_i32 = arith.constant 0 : i32
    %c0_i32_0 = arith.constant 0 : i32
    %c0_i32_1 = arith.constant 0 : i32
    return %c0_i32, %c0_i32_0 : i32, i32
  }
  func.func @transform_3(%arg0: i32) -> (i32, i32) {
    %c0_i32 = arith.constant 0 : i32
    %c0_i32_0 = arith.constant 0 : i32
    return %arg0, %c0_i32 : i32, i32
  }
}

module attributes {stable_mosaic.version = 11 : i64} {
  func.func @mlp_kernel(%arg0: i32, %arg1: memref<16x512xbf16, #tpu.memory_space<vmem>>, %arg2: memref<512x128xbf16, #tpu.memory_space<vmem>>, %arg3: memref<1x128xf32, #tpu.memory_space<vmem>>, %arg4: memref<128x128xbf16, #tpu.memory_space<vmem>>, %arg5: memref<1x128xf32, #tpu.memory_space<vmem>>, %arg6: memref<16x128xf32, #tpu.memory_space<vmem>>) attributes {dimension_semantics = [#tpu.dimension_semantics<parallel>], iteration_bounds = array<i64: 1>, scalar_prefetch = 0 : i64, scratch_operands = 0 : i64, tpu.core_type = #tpu.core_type<tc>, window_params = [{pipeline_mode = #tpu.pipeline_mode<synchronous>, transform_indices = @transform_0, window_bounds = array<i64: 16, 512>}, {pipeline_mode = #tpu.pipeline_mode<synchronous>, transform_indices = @transform_1, window_bounds = array<i64: 512, 128>}, {pipeline_mode = #tpu.pipeline_mode<synchronous>, transform_indices = @transform_2, window_bounds = array<i64: 1, 128>}, {pipeline_mode = #tpu.pipeline_mode<synchronous>, transform_indices = @transform_3, window_bounds = array<i64: 128, 128>}, {pipeline_mode = #tpu.pipeline_mode<synchronous>, transform_indices = @transform_4, window_bounds = array<i64: 1, 128>}, {pipeline_mode = #tpu.pipeline_mode<synchronous>, transform_indices = @transform_5, window_bounds = array<i64: 16, 128>}]} {
    %c0 = arith.constant 0 : index
    %c0_0 = arith.constant 0 : index
    %0 = vector.load %arg1[%c0, %c0_0] : memref<16x512xbf16, #tpu.memory_space<vmem>>, vector<16x512xbf16>
    %c0_1 = arith.constant 0 : index
    %c0_2 = arith.constant 0 : index
    %1 = vector.load %arg2[%c0_1, %c0_2] : memref<512x128xbf16, #tpu.memory_space<vmem>>, vector<512x128xbf16>
    %cst = arith.constant dense<0.000000e+00> : vector<16x128xf32>
    %2 = tpu.matmul %0, %1, %cst {dimension_numbers = #tpu.dot_dimension_numbers<[1], [0], [0], [1], [0, 0, 1, 1], [], []>} : vector<16x512xbf16>, vector<512x128xbf16>, vector<16x128xf32> -> vector<16x128xf32>
    %c0_3 = arith.constant 0 : index
    %c0_4 = arith.constant 0 : index
    %3 = vector.load %arg3[%c0_3, %c0_4] : memref<1x128xf32, #tpu.memory_space<vmem>>, vector<1x128xf32>
    %4 = vector.broadcast %3 : vector<1x128xf32> to vector<16x128xf32>
    %5 = arith.addf %2, %4 : vector<16x128xf32>
    %cst_5 = arith.constant 0.000000e+00 : f32
    %6 = vector.broadcast %cst_5 : f32 to vector<16x128xf32>
    %7 = arith.maximumf %5, %6 : vector<16x128xf32>
    %8 = arith.truncf %7 : vector<16x128xf32> to vector<16x128xbf16>
    %c0_6 = arith.constant 0 : index
    %c0_7 = arith.constant 0 : index
    %9 = vector.load %arg4[%c0_6, %c0_7] : memref<128x128xbf16, #tpu.memory_space<vmem>>, vector<128x128xbf16>
    %cst_8 = arith.constant dense<0.000000e+00> : vector<16x128xf32>
    %10 = tpu.matmul %8, %9, %cst_8 {dimension_numbers = #tpu.dot_dimension_numbers<[1], [0], [0], [1], [0, 0, 1, 1], [], []>} : vector<16x128xbf16>, vector<128x128xbf16>, vector<16x128xf32> -> vector<16x128xf32>
    %c0_9 = arith.constant 0 : index
    %c0_10 = arith.constant 0 : index
    %11 = vector.load %arg5[%c0_9, %c0_10] : memref<1x128xf32, #tpu.memory_space<vmem>>, vector<1x128xf32>
    %12 = vector.broadcast %11 : vector<1x128xf32> to vector<16x128xf32>
    %13 = arith.addf %10, %12 : vector<16x128xf32>
    %c0_11 = arith.constant 0 : index
    %c0_12 = arith.constant 0 : index
    %14 = vector.load %arg6[%c0_11, %c0_12] : memref<16x128xf32, #tpu.memory_space<vmem>>, vector<16x128xf32>
    tpu.vector_store %arg6[%c0_11, %c0_12], %13 {strides = array<i32>} : memref<16x128xf32, #tpu.memory_space<vmem>>, vector<16x128xf32>,
    return
  }
  func.func @transform_0(%arg0: i32) -> (i32, i32) {
    %c0_i32 = arith.constant 0 : i32
    %c0_i32_0 = arith.constant 0 : i32
    %c0_i32_1 = arith.constant 0 : i32
    return %c0_i32, %c0_i32_0 : i32, i32
  }
  func.func @transform_1(%arg0: i32) -> (i32, i32) {
    %c0_i32 = arith.constant 0 : i32
    %c0_i32_0 = arith.constant 0 : i32
    %c0_i32_1 = arith.constant 0 : i32
    return %c0_i32, %c0_i32_0 : i32, i32
  }
  func.func @transform_2(%arg0: i32) -> (i32, i32) {
    %c0_i32 = arith.constant 0 : i32
    %c0_i32_0 = arith.constant 0 : i32
    %c0_i32_1 = arith.constant 0 : i32
    return %c0_i32, %c0_i32_0 : i32, i32
  }
  func.func @transform_3(%arg0: i32) -> (i32, i32) {
    %c0_i32 = arith.constant 0 : i32
    %c0_i32_0 = arith.constant 0 : i32
    %c0_i32_1 = arith.constant 0 : i32
    return %c0_i32, %c0_i32_0 : i32, i32
  }
  func.func @transform_4(%arg0: i32) -> (i32, i32) {
    %c0_i32 = arith.constant 0 : i32
    %c0_i32_0 = arith.constant 0 : i32
    %c0_i32_1 = arith.constant 0 : i32
    return %c0_i32, %c0_i32_0 : i32, i32
  }
  func.func @transform_5(%arg0: i32) -> (i32, i32) {
    %c0_i32 = arith.constant 0 : i32
    %c0_i32_0 = arith.constant 0 : i32
    %c0_i32_1 = arith.constant 0 : i32
    return %c0_i32, %c0_i32_0 : i32, i32
  }
}

</mosaic_0001>

<llo_original>
// kernel: net_forward.3
$region0: #{net_forward.3}
  #allocation0 [shape = 'u32[]', space=smem, size = 0x4, offset = 0x4, fixed_abs, tag = 'smem constant byte address 0x4 - core index']
  #allocation1 [shape = 'u32[72,128]{1,0:T(1,128)}', space=vmem, size = 0x9000, scoped, tag = 'internal scratch']
  %s0 = inlined_call_operand.vmem [shape: bf16[2048,32], index: 0, kind: input, shape index: {}]
  %s1 = inlined_call_operand.vmem [shape: bf16[32,128], index: 1, kind: input, shape index: {}]
  %s2 = inlined_call_operand.vmem [shape: f32[1,128], index: 2, kind: input, shape index: {}]
  %s3 = inlined_call_operand.vmem [shape: bf16[512,128], index: 3, kind: output, shape index: {}]
  %s4 = sld [smem:[#allocation0]]
  $region45: #{net_forward.3} parent=0
    _
  %s6 = ssub.s32 1, %s4
  %s7 = scalar_select 0, %s6, %s4
  loop: start=0, step=1, limit=4
  $region2: #{net_forward.3} parent=0 // loop_pre_header
    _
  $region3: #{net_forward.3} parent=0 // loop_header
    %s9 = sphi 0, %s13
    %p10 = scmp.ge.s32.totalorder %s9, 4
    %s19 = sphi 0, %s21
    %s22 = sphi 0, %s19
    %s23 = sphi 0, %s22
    %s39 = sphi 0, %s23
    %s43 = sphi 0, %s43
    %s45 = sphi 0, %s43
    %s46 = sphi 0, %s45
    %s60 = sphi 0, %s46
    %s64 = sphi 0, %s64
    %s66 = sphi 0, %s64
    %s67 = sphi 0, %s66
    %s81 = sphi 0, %s67
    %s87 = sphi 0, %s89
    %s90 = sphi 0, %s87
    %s91 = sphi 0, %s90
    %s107 = sphi 0, %s91
  $region4: #{net_forward.3} parent=0 // loop_header_branch
    %12 = sbr.rel (%p10) target = $region8
  $region5: #{net_forward.3} parent=0 // loop_body
    %s14 = ssub.s32 %s9, 1
    %s15 = ssub.s32 %s9, 2
    %s16 = sadd.s32 %s9, 1
    %s17 = ssub.s32 %s9, %s16
    %p18 = scmp.eq.s32.totalorder %s17, 0
    %s20 = sadd.s32 %s19, 1
    %s21 = scalar_select %p18, %s19, %s20
    %p24 = pneg %p18
    %p25 = scmp.eq.s32.totalorder %s9, 1
    %p26 = por %p24, %p25
    %p27 = scmp.ne.s32.totalorder %s19, %s22
    %p28 = scmp.eq.s32.totalorder %s9, 0
    %p29 = por %p27, %p28
    %p30 = scmp.ne.s32.totalorder %s19, %s22
    %p31 = scmp.eq.s32.totalorder %s14, 1
    %p32 = por %p30, %p31
    %p33 = scmp.ne.s32.totalorder %s22, %s23
    %p34 = scmp.eq.s32.totalorder %s14, 0
    %p35 = por %p33, %p34
    %p36 = scmp.ne.s32.totalorder %s22, %s23
    %p37 = scmp.eq.s32.totalorder %s15, 1
    %p38 = por %p36, %p37
    %p40 = scmp.ne.s32.totalorder %s23, %s39
    %p41 = scmp.eq.s32.totalorder %s15, 0
    %p42 = por %p40, %p41
    %s44 = sadd.s32 %s43, 1
    %p47 = scmp.eq.s32.totalorder %s9, 1
    %p48 = scmp.ne.s32.totalorder %s43, %s45
    %p49 = scmp.eq.s32.totalorder %s9, 0
    %p50 = por %p48, %p49
    %p51 = scmp.ne.s32.totalorder %s43, %s45
    %p52 = scmp.eq.s32.totalorder %s14, 1
    %p53 = por %p51, %p52
    %p54 = scmp.ne.s32.totalorder %s45, %s46
    %p55 = scmp.eq.s32.totalorder %s14, 0
    %p56 = por %p54, %p55
    %p57 = scmp.ne.s32.totalorder %s45, %s46
    %p58 = scmp.eq.s32.totalorder %s15, 1
    %p59 = por %p57, %p58
    %p61 = scmp.ne.s32.totalorder %s46, %s60
    %p62 = scmp.eq.s32.totalorder %s15, 0
    %p63 = por %p61, %p62
    %s65 = sadd.s32 %s64, 1
    %p68 = scmp.eq.s32.totalorder %s9, 1
    %p69 = scmp.ne.s32.totalorder %s64, %s66
    %p70 = scmp.eq.s32.totalorder %s9, 0
    %p71 = por %p69, %p70
    %p72 = scmp.ne.s32.totalorder %s64, %s66
    %p73 = scmp.eq.s32.totalorder %s14, 1
    %p74 = por %p72, %p73
    %p75 = scmp.ne.s32.totalorder %s66, %s67
    %p76 = scmp.eq.s32.totalorder %s14, 0
    %p77 = por %p75, %p76
    %p78 = scmp.ne.s32.totalorder %s66, %s67
    %p79 = scmp.eq.s32.totalorder %s15, 1
    %p80 = por %p78, %p79
    %p82 = scmp.ne.s32.totalorder %s67, %s81
    %p83 = scmp.eq.s32.totalorder %s15, 0
    %p84 = por %p82, %p83
    %s85 = ssub.s32 %s9, %s16
    %p86 = scmp.eq.s32.totalorder %s85, 0
    %s88 = sadd.s32 %s87, 1
    %s89 = scalar_select %p86, %s87, %s88
    %p92 = pneg %p86
    %p93 = scmp.eq.s32.totalorder %s9, 1
    %p94 = por %p92, %p93
    %p95 = scmp.ne.s32.totalorder %s87, %s90
    %p96 = scmp.eq.s32.totalorder %s9, 0
    %p97 = por %p95, %p96
    %p98 = scmp.ne.s32.totalorder %s87, %s90
    %p99 = scmp.eq.s32.totalorder %s14, 1
    %p100 = por %p98, %p99
    %p101 = scmp.ne.s32.totalorder %s90, %s91
    %p102 = scmp.eq.s32.totalorder %s14, 0
    %p103 = por %p101, %p102
    %p104 = scmp.ne.s32.totalorder %s90, %s91
    %p105 = scmp.eq.s32.totalorder %s15, 1
    %p106 = por %p104, %p105
    %p108 = scmp.ne.s32.totalorder %s91, %s107
    %p109 = scmp.eq.s32.totalorder %s15, 0
    %p110 = por %p108, %p109
    %p111 = scmp.le.s32.totalorder 1, %s9
    %p112 = scmp.lt.s32.totalorder %s9, 3
    %p113 = pnand %p111, %p112
    %p114 = pneg %p113
    // Predicated region
    $region9: #{net_forward.3} parent=5 // pred_check
      _
    $region10: #{net_forward.3} parent=5 // pred_check_branch
      %116 = sbr.rel (%p113) target = $region12
    $region11: #{net_forward.3} parent=5 // pred_region
      %s117 = ssub.s32 %s9, 1
      // Predicated region
      $region13: #{net_forward.3} parent=11 // pred_check
        %p118 = pneg %p56
      $region14: #{net_forward.3} parent=11 // pred_check_branch
        %120 = sbr.rel (%p118) target = $region16
      $region15: #{net_forward.3} parent=11 // pred_region
        _
      $region16: #{net_forward.3} parent=11 // pred_fallthru
        _
      // Predicated region
      $region17: #{net_forward.3} parent=11 // pred_check
        %p121 = pneg %p77
      $region18: #{net_forward.3} parent=11 // pred_check_branch
        %123 = sbr.rel (%p121) target = $region20
      $region19: #{net_forward.3} parent=11 // pred_region
        _
      $region20: #{net_forward.3} parent=11 // pred_fallthru
        _
    $region12: #{net_forward.3} parent=5 // pred_fallthru
      _
    %p124 = scmp.lt.s32.totalorder %s9, 2
    // Predicated region
    $region21: #{net_forward.3} parent=5 // pred_check
      %p125 = pneg %p124
    $region22: #{net_forward.3} parent=5 // pred_check_branch
      %127 = sbr.rel (%p125) target = $region24
    $region23: #{net_forward.3} parent=5 // pred_region
      // Predicated region
      $region25: #{net_forward.3} parent=23 // pred_check
        %p128 = pneg %p29
      $region26: #{net_forward.3} parent=23 // pred_check_branch
        %130 = sbr.rel (%p128) target = $region28
      $region27: #{net_forward.3} parent=23 // pred_region
        %s131 = smul.u32 128, %s9
        %p132 = scmp.lt.s32.totalorder %s131, 255
        %s133 = scalar_select %p132, %s131, 255
        %s134 = smul.addr %s133, 4
        %s135 = scalar_lea.vmem %s0, %s134
        %s136 = smul.u32 128, %s9
      $region28: #{net_forward.3} parent=23 // pred_fallthru
        _
    $region24: #{net_forward.3} parent=5 // pred_fallthru
      _
    %p137 = scmp.le.s32.totalorder 1, %s9
    %p138 = scmp.lt.s32.totalorder %s9, 3
    %p139 = pnand %p137, %p138
    %p140 = pneg %p139
    // Predicated region
    $region29: #{net_forward.3} parent=5 // pred_check
      _
    $region30: #{net_forward.3} parent=5 // pred_check_branch
      %142 = sbr.rel (%p139) target = $region32
    $region31: #{net_forward.3} parent=5 // pred_region
      %s143 = ssub.s32 %s9, 1
      %s144 = smul.u32 128, %s14
      %p145 = scmp.lt.s32.totalorder %s144, 255
      %s146 = scalar_select %p145, %s144, 255
      %s147 = smul.addr %s146, 4
      %s148 = scalar_lea.vmem %s0, %s147
      %p149 = pneg %p35
      %p150 = pneg %p32
      %p151 = pneg %p56
      %p152 = pneg %p53
      %p153 = pneg %p77
      %p154 = pneg %p74
      %p155 = pneg %p103
      %p156 = pneg %p100
      %s157 = smul.u32 32, %s14
      %p158 = scmp.lt.s32.totalorder %s157, 63
      %s159 = scalar_select %p158, %s157, 63
      %s160 = smul.addr %s159, 4
      %s161 = scalar_lea.vmem %s3, %s160
      %s162 = smul.u32 128, %s14
      %p163 = scmp.lt.s32.totalorder %s162, 255
      %s164 = scalar_select %p163, %s162, 255
      %s165 = smul.addr %s164, 4
      %s166 = scalar_lea.vmem %s0, %s165
      %s167 = smul.u32 128, %s14
      %s168 = smul.u32 32, %s14
      %p169 = scmp.lt.s32.totalorder %s168, 63
      %s170 = scalar_select %p169, %s168, 63
      %s171 = smul.addr %s170, 4
      %s172 = scalar_lea.vmem %s3, %s171
      %s173 = smul.u32 32, %s14
      %v175 = vld [vmem:[%s166] sm:$0xf]
      %v176 = vld [vmem:[%s166 + $0x4] sm:$0xf]
      %v177 = vld [vmem:[%s166 + $0x8] sm:$0xf]
      %v178 = vld [vmem:[%s166 + $0xc] sm:$0xf]
      %v179 = vld [vmem:[%s166 + $0x10] sm:$0xf]
      %v180 = vld [vmem:[%s166 + $0x14] sm:$0xf]
      %v181 = vld [vmem:[%s166 + $0x18] sm:$0xf]
      %v182 = vld [vmem:[%s166 + $0x1c] sm:$0xf]
      %v183 = vld [vmem:[%s166 + $0x20] sm:$0xf]
      %v184 = vld [vmem:[%s166 + $0x24] sm:$0xf]
      %v185 = vld [vmem:[%s166 + $0x28] sm:$0xf]
      %v186 = vld [vmem:[%s166 + $0x2c] sm:$0xf]
      %v187 = vld [vmem:[%s166 + $0x30] sm:$0xf]
      %v188 = vld [vmem:[%s166 + $0x34] sm:$0xf]
      %v189 = vld [vmem:[%s166 + $0x38] sm:$0xf]
      %v190 = vld [vmem:[%s166 + $0x3c] sm:$0xf]
      %v191 = vld [vmem:[%s166 + $0x40] sm:$0xf]
      %v192 = vld [vmem:[%s166 + $0x44] sm:$0xf]
      %v193 = vld [vmem:[%s166 + $0x48] sm:$0xf]
      %v194 = vld [vmem:[%s166 + $0x4c] sm:$0xf]
      %v195 = vld [vmem:[%s166 + $0x50] sm:$0xf]
      %v196 = vld [vmem:[%s166 + $0x54] sm:$0xf]
      %v197 = vld [vmem:[%s166 + $0x58] sm:$0xf]
      %v198 = vld [vmem:[%s166 + $0x5c] sm:$0xf]
      %v199 = vld [vmem:[%s166 + $0x60] sm:$0xf]
      %v200 = vld [vmem:[%s166 + $0x64] sm:$0xf]
      %v201 = vld [vmem:[%s166 + $0x68] sm:$0xf]
      %v202 = vld [vmem:[%s166 + $0x6c] sm:$0xf]
      %v203 = vld [vmem:[%s166 + $0x70] sm:$0xf]
      %v204 = vld [vmem:[%s166 + $0x74] sm:$0xf]
      %v205 = vld [vmem:[%s166 + $0x78] sm:$0xf]
      %v206 = vld [vmem:[%s166 + $0x7c] sm:$0xf]
      %v207 = vld [vmem:[%s166 + $0x80] sm:$0xf]
      %v208 = vld [vmem:[%s166 + $0x84] sm:$0xf]
      %v209 = vld [vmem:[%s166 + $0x88] sm:$0xf]
      %v210 = vld [vmem:[%s166 + $0x8c] sm:$0xf]
      %v211 = vld [vmem:[%s166 + $0x90] sm:$0xf]
      %v212 = vld [vmem:[%s166 + $0x94] sm:$0xf]
      %v213 = vld [vmem:[%s166 + $0x98] sm:$0xf]
      %v214 = vld [vmem:[%s166 + $0x9c] sm:$0xf]
      %v215 = vld [vmem:[%s166 + $0xa0] sm:$0xf]
      %v216 = vld [vmem:[%s166 + $0xa4] sm:$0xf]
      %v217 = vld [vmem:[%s166 + $0xa8] sm:$0xf]
      %v218 = vld [vmem:[%s166 + $0xac] sm:$0xf]
      %v219 = vld [vmem:[%s166 + $0xb0] sm:$0xf]
      %v220 = vld [vmem:[%s166 + $0xb4] sm:$0xf]
      %v221 = vld [vmem:[%s166 + $0xb8] sm:$0xf]
      %v222 = vld [vmem:[%s166 + $0xbc] sm:$0xf]
      %v223 = vld [vmem:[%s166 + $0xc0] sm:$0xf]
      %v224 = vld [vmem:[%s166 + $0xc4] sm:$0xf]
      %v225 = vld [vmem:[%s166 + $0xc8] sm:$0xf]
      %v226 = vld [vmem:[%s166 + $0xcc] sm:$0xf]
      %v227 = vld [vmem:[%s166 + $0xd0] sm:$0xf]
      %v228 = vld [vmem:[%s166 + $0xd4] sm:$0xf]
      %v229 = vld [vmem:[%s166 + $0xd8] sm:$0xf]
      %v230 = vld [vmem:[%s166 + $0xdc] sm:$0xf]
      %v231 = vld [vmem:[%s166 + $0xe0] sm:$0xf]
      %v232 = vld [vmem:[%s166 + $0xe4] sm:$0xf]
      %v233 = vld [vmem:[%s166 + $0xe8] sm:$0xf]
      %v234 = vld [vmem:[%s166 + $0xec] sm:$0xf]
      %v235 = vld [vmem:[%s166 + $0xf0] sm:$0xf]
      %v236 = vld [vmem:[%s166 + $0xf4] sm:$0xf]
      %v237 = vld [vmem:[%s166 + $0xf8] sm:$0xf]
      %v238 = vld [vmem:[%s166 + $0xfc] sm:$0xf]
      %v239 = vld [vmem:[%s166 + $0x100] sm:$0xf]
      %v240 = vld [vmem:[%s166 + $0x104] sm:$0xf]
      %v241 = vld [vmem:[%s166 + $0x108] sm:$0xf]
      %v242 = vld [vmem:[%s166 + $0x10c] sm:$0xf]
      %v243 = vld [vmem:[%s166 + $0x110] sm:$0xf]
      %v244 = vld [vmem:[%s166 + $0x114] sm:$0xf]
      %v245 = vld [vmem:[%s166 + $0x118] sm:$0xf]
      %v246 = vld [vmem:[%s166 + $0x11c] sm:$0xf]
      %v247 = vld [vmem:[%s166 + $0x120] sm:$0xf]
      %v248 = vld [vmem:[%s166 + $0x124] sm:$0xf]
      %v249 = vld [vmem:[%s166 + $0x128] sm:$0xf]
      %v250 = vld [vmem:[%s166 + $0x12c] sm:$0xf]
      %v251 = vld [vmem:[%s166 + $0x130] sm:$0xf]
      %v252 = vld [vmem:[%s166 + $0x134] sm:$0xf]
      %v253 = vld [vmem:[%s166 + $0x138] sm:$0xf]
      %v254 = vld [vmem:[%s166 + $0x13c] sm:$0xf]
      %v255 = vld [vmem:[%s166 + $0x140] sm:$0xf]
      %v256 = vld [vmem:[%s166 + $0x144] sm:$0xf]
      %v257 = vld [vmem:[%s166 + $0x148] sm:$0xf]
      %v258 = vld [vmem:[%s166 + $0x14c] sm:$0xf]
      %v259 = vld [vmem:[%s166 + $0x150] sm:$0xf]
      %v260 = vld [vmem:[%s166 + $0x154] sm:$0xf]
      %v261 = vld [vmem:[%s166 + $0x158] sm:$0xf]
      %v262 = vld [vmem:[%s166 + $0x15c] sm:$0xf]
      %v263 = vld [vmem:[%s166 + $0x160] sm:$0xf]
      %v264 = vld [vmem:[%s166 + $0x164] sm:$0xf]
      %v265 = vld [vmem:[%s166 + $0x168] sm:$0xf]
      %v266 = vld [vmem:[%s166 + $0x16c] sm:$0xf]
      %v267 = vld [vmem:[%s166 + $0x170] sm:$0xf]
      %v268 = vld [vmem:[%s166 + $0x174] sm:$0xf]
      %v269 = vld [vmem:[%s166 + $0x178] sm:$0xf]
      %v270 = vld [vmem:[%s166 + $0x17c] sm:$0xf]
      %v271 = vld [vmem:[%s166 + $0x180] sm:$0xf]
      %v272 = vld [vmem:[%s166 + $0x184] sm:$0xf]
      %v273 = vld [vmem:[%s166 + $0x188] sm:$0xf]
      %v274 = vld [vmem:[%s166 + $0x18c] sm:$0xf]
      %v275 = vld [vmem:[%s166 + $0x190] sm:$0xf]
      %v276 = vld [vmem:[%s166 + $0x194] sm:$0xf]
      %v277 = vld [vmem:[%s166 + $0x198] sm:$0xf]
      %v278 = vld [vmem:[%s166 + $0x19c] sm:$0xf]
      %v279 = vld [vmem:[%s166 + $0x1a0] sm:$0xf]
      %v280 = vld [vmem:[%s166 + $0x1a4] sm:$0xf]
      %v281 = vld [vmem:[%s166 + $0x1a8] sm:$0xf]
      %v282 = vld [vmem:[%s166 + $0x1ac] sm:$0xf]
      %v283 = vld [vmem:[%s166 + $0x1b0] sm:$0xf]
      %v284 = vld [vmem:[%s166 + $0x1b4] sm:$0xf]
      %v285 = vld [vmem:[%s166 + $0x1b8] sm:$0xf]
      %v286 = vld [vmem:[%s166 + $0x1bc] sm:$0xf]
      %v287 = vld [vmem:[%s166 + $0x1c0] sm:$0xf]
      %v288 = vld [vmem:[%s166 + $0x1c4] sm:$0xf]
      %v289 = vld [vmem:[%s166 + $0x1c8] sm:$0xf]
      %v290 = vld [vmem:[%s166 + $0x1cc] sm:$0xf]
      %v291 = vld [vmem:[%s166 + $0x1d0] sm:$0xf]
      %v292 = vld [vmem:[%s166 + $0x1d4] sm:$0xf]
      %v293 = vld [vmem:[%s166 + $0x1d8] sm:$0xf]
      %v294 = vld [vmem:[%s166 + $0x1dc] sm:$0xf]
      %v295 = vld [vmem:[%s166 + $0x1e0] sm:$0xf]
      %v296 = vld [vmem:[%s166 + $0x1e4] sm:$0xf]
      %v297 = vld [vmem:[%s166 + $0x1e8] sm:$0xf]
      %v298 = vld [vmem:[%s166 + $0x1ec] sm:$0xf]
      %v299 = vld [vmem:[%s166 + $0x1f0] sm:$0xf]
      %v300 = vld [vmem:[%s166 + $0x1f4] sm:$0xf]
      %v301 = vld [vmem:[%s166 + $0x1f8] sm:$0xf]
      %v302 = vld [vmem:[%s166 + $0x1fc] sm:$0xf]
      %v303 = vld [vmem:[%s1] sm:$0xf]
      %v304 = vld [vmem:[%s1 + $0x4] sm:$0xf]
      %v305 = vld [vmem:[%s1 + $0x8] sm:$0xf]
      %v306 = vld [vmem:[%s1 + $0xc] sm:$0xf]
      %v307 = vld [vmem:[%s2] sm:$0x1]
      %v309 = vperm.slane %v307, 0
      %v439 = vunpack.c.l.b16 %v175
      %v440 = vunpack.c.l.b16 %v176
      %v441 = vunpack.c.l.b16 %v177
      %v442 = vunpack.c.l.b16 %v178
      %v443 = vunpack.c.l.b16 %v179
      %v444 = vunpack.c.l.b16 %v180
      %v445 = vunpack.c.l.b16 %v181
      %v446 = vunpack.c.l.b16 %v182
      %v447 = vunpack.c.l.b16 %v183
      %v448 = vunpack.c.l.b16 %v184
      %v449 = vunpack.c.l.b16 %v185
      %v450 = vunpack.c.l.b16 %v186
      %v451 = vunpack.c.l.b16 %v187
      %v452 = vunpack.c.l.b16 %v188
      %v453 = vunpack.c.l.b16 %v189
      %v454 = vunpack.c.l.b16 %v190
      %v455 = vunpack.c.l.b16 %v191
      %v456 = vunpack.c.l.b16 %v192
      %v457 = vunpack.c.l.b16 %v193
      %v458 = vunpack.c.l.b16 %v194
      %v459 = vunpack.c.l.b16 %v195
      %v460 = vunpack.c.l.b16 %v196
      %v461 = vunpack.c.l.b16 %v197
      %v462 = vunpack.c.l.b16 %v198
      %v463 = vunpack.c.l.b16 %v199
      %v464 = vunpack.c.l.b16 %v200
      %v465 = vunpack.c.l.b16 %v201
      %v466 = vunpack.c.l.b16 %v202
      %v467 = vunpack.c.l.b16 %v203
      %v468 = vunpack.c.l.b16 %v204
      %v469 = vunpack.c.l.b16 %v205
      %v470 = vunpack.c.l.b16 %v206
      %v471 = vunpack.c.l.b16 %v207
      %v472 = vunpack.c.l.b16 %v208
      %v473 = vunpack.c.l.b16 %v209
      %v474 = vunpack.c.l.b16 %v210
      %v475 = vunpack.c.l.b16 %v211
      %v476 = vunpack.c.l.b16 %v212
      %v477 = vunpack.c.l.b16 %v213
      %v478 = vunpack.c.l.b16 %v214
      %v479 = vunpack.c.l.b16 %v215
      %v480 = vunpack.c.l.b16 %v216
      %v481 = vunpack.c.l.b16 %v217
      %v482 = vunpack.c.l.b16 %v218
      %v483 = vunpack.c.l.b16 %v219
      %v484 = vunpack.c.l.b16 %v220
      %v485 = vunpack.c.l.b16 %v221
      %v486 = vunpack.c.l.b16 %v222
      %v487 = vunpack.c.l.b16 %v223
      %v488 = vunpack.c.l.b16 %v224
      %v489 = vunpack.c.l.b16 %v225
      %v490 = vunpack.c.l.b16 %v226
      %v491 = vunpack.c.l.b16 %v227
      %v492 = vunpack.c.l.b16 %v228
      %v493 = vunpack.c.l.b16 %v229
      %v494 = vunpack.c.l.b16 %v230
      %v495 = vunpack.c.l.b16 %v231
      %v496 = vunpack.c.l.b16 %v232
      %v497 = vunpack.c.l.b16 %v233
      %v498 = vunpack.c.l.b16 %v234
      %v499 = vunpack.c.l.b16 %v235
      %v500 = vunpack.c.l.b16 %v236
      %v501 = vunpack.c.l.b16 %v237
      %v502 = vunpack.c.l.b16 %v238
      %v503 = vunpack.c.l.b16 %v239
      %v504 = vunpack.c.l.b16 %v240
      %v505 = vunpack.c.l.b16 %v241
      %v506 = vunpack.c.l.b16 %v242
      %v507 = vunpack.c.l.b16 %v243
      %v508 = vunpack.c.l.b16 %v244
      %v509 = vunpack.c.l.b16 %v245
      %v510 = vunpack.c.l.b16 %v246
      %v511 = vunpack.c.l.b16 %v247
      %v512 = vunpack.c.l.b16 %v248
      %v513 = vunpack.c.l.b16 %v249
      %v514 = vunpack.c.l.b16 %v250
      %v515 = vunpack.c.l.b16 %v251
      %v516 = vunpack.c.l.b16 %v252
      %v517 = vunpack.c.l.b16 %v253
      %v518 = vunpack.c.l.b16 %v254
      %v519 = vunpack.c.l.b16 %v255
      %v520 = vunpack.c.l.b16 %v256
      %v521 = vunpack.c.l.b16 %v257
      %v522 = vunpack.c.l.b16 %v258
      %v523 = vunpack.c.l.b16 %v259
      %v524 = vunpack.c.l.b16 %v260
      %v525 = vunpack.c.l.b16 %v261
      %v526 = vunpack.c.l.b16 %v262
      %v527 = vunpack.c.l.b16 %v263
      %v528 = vunpack.c.l.b16 %v264
      %v529 = vunpack.c.l.b16 %v265
      %v530 = vunpack.c.l.b16 %v266
      %v531 = vunpack.c.l.b16 %v267
      %v532 = vunpack.c.l.b16 %v268
      %v533 = vunpack.c.l.b16 %v269
      %v534 = vunpack.c.l.b16 %v270
      %v535 = vunpack.c.l.b16 %v271
      %v536 = vunpack.c.l.b16 %v272
      %v537 = vunpack.c.l.b16 %v273
      %v538 = vunpack.c.l.b16 %v274
      %v539 = vunpack.c.l.b16 %v275
      %v540 = vunpack.c.l.b16 %v276
      %v541 = vunpack.c.l.b16 %v277
      %v542 = vunpack.c.l.b16 %v278
      %v543 = vunpack.c.l.b16 %v279
      %v544 = vunpack.c.l.b16 %v280
      %v545 = vunpack.c.l.b16 %v281
      %v546 = vunpack.c.l.b16 %v282
      %v547 = vunpack.c.l.b16 %v283
      %v548 = vunpack.c.l.b16 %v284
      %v549 = vunpack.c.l.b16 %v285
      %v550 = vunpack.c.l.b16 %v286
      %v551 = vunpack.c.l.b16 %v287
      %v552 = vunpack.c.l.b16 %v288
      %v553 = vunpack.c.l.b16 %v289
      %v554 = vunpack.c.l.b16 %v290
      %v555 = vunpack.c.l.b16 %v291
      %v556 = vunpack.c.l.b16 %v292
      %v557 = vunpack.c.l.b16 %v293
      %v558 = vunpack.c.l.b16 %v294
      %v559 = vunpack.c.l.b16 %v295
      %v560 = vunpack.c.l.b16 %v296
      %v561 = vunpack.c.l.b16 %v297
      %v562 = vunpack.c.l.b16 %v298
      %v563 = vunpack.c.l.b16 %v299
      %v564 = vunpack.c.l.b16 %v300
      %v565 = vunpack.c.l.b16 %v301
      %v566 = vunpack.c.l.b16 %v302
      %v567 = vpack.c.b16 %v440, %v439
      %v568 = vpack.c.b16 %v442, %v441
      %v569 = vpack.c.b16 %v444, %v443
      %v570 = vpack.c.b16 %v446, %v445
      %v571 = vpack.c.b16 %v448, %v447
      %v572 = vpack.c.b16 %v450, %v449
      %v573 = vpack.c.b16 %v452, %v451
      %v574 = vpack.c.b16 %v454, %v453
      %v575 = vpack.c.b16 %v456, %v455
      %v576 = vpack.c.b16 %v458, %v457
      %v577 = vpack.c.b16 %v460, %v459
      %v578 = vpack.c.b16 %v462, %v461
      %v579 = vpack.c.b16 %v464, %v463
      %v580 = vpack.c.b16 %v466, %v465
      %v581 = vpack.c.b16 %v468, %v467
      %v582 = vpack.c.b16 %v470, %v469
      %v583 = vpack.c.b16 %v472, %v471
      %v584 = vpack.c.b16 %v474, %v473
      %v585 = vpack.c.b16 %v476, %v475
      %v586 = vpack.c.b16 %v478, %v477
      %v587 = vpack.c.b16 %v480, %v479
      %v588 = vpack.c.b16 %v482, %v481
      %v589 = vpack.c.b16 %v484, %v483
      %v590 = vpack.c.b16 %v486, %v485
      %v591 = vpack.c.b16 %v488, %v487
      %v592 = vpack.c.b16 %v490, %v489
      %v593 = vpack.c.b16 %v492, %v491
      %v594 = vpack.c.b16 %v494, %v493
      %v595 = vpack.c.b16 %v496, %v495
      %v596 = vpack.c.b16 %v498, %v497
      %v597 = vpack.c.b16 %v500, %v499
      %v598 = vpack.c.b16 %v502, %v501
      %v599 = vpack.c.b16 %v504, %v503
      %v600 = vpack.c.b16 %v506, %v505
      %v601 = vpack.c.b16 %v508, %v507
      %v602 = vpack.c.b16 %v510, %v509
      %v603 = vpack.c.b16 %v512, %v511
      %v604 = vpack.c.b16 %v514, %v513
      %v605 = vpack.c.b16 %v516, %v515
      %v606 = vpack.c.b16 %v518, %v517
      %v607 = vpack.c.b16 %v520, %v519
      %v608 = vpack.c.b16 %v522, %v521
      %v609 = vpack.c.b16 %v524, %v523
      %v610 = vpack.c.b16 %v526, %v525
      %v611 = vpack.c.b16 %v528, %v527
      %v612 = vpack.c.b16 %v530, %v529
      %v613 = vpack.c.b16 %v532, %v531
      %v614 = vpack.c.b16 %v534, %v533
      %v615 = vpack.c.b16 %v536, %v535
      %v616 = vpack.c.b16 %v538, %v537
      %v617 = vpack.c.b16 %v540, %v539
      %v618 = vpack.c.b16 %v542, %v541
      %v619 = vpack.c.b16 %v544, %v543
      %v620 = vpack.c.b16 %v546, %v545
      %v621 = vpack.c.b16 %v548, %v547
      %v622 = vpack.c.b16 %v550, %v549
      %v623 = vpack.c.b16 %v552, %v551
      %v624 = vpack.c.b16 %v554, %v553
      %v625 = vpack.c.b16 %v556, %v555
      %v626 = vpack.c.b16 %v558, %v557
      %v627 = vpack.c.b16 %v560, %v559
      %v628 = vpack.c.b16 %v562, %v561
      %v629 = vpack.c.b16 %v564, %v563
      %v630 = vpack.c.b16 %v566, %v565
      %v635 = vunpack.c.l.b16 %v303
      %v636 = vunpack.c.l.b16 %v304
      %v637 = vunpack.c.l.b16 %v305
      %v638 = vunpack.c.l.b16 %v306
      %v639 = vpack.c.b16 %v636, %v635
      %v640 = vpack.c.b16 %v638, %v637
      %vm643 = vcmask 261120
      %v645 = vsel %vm643, %v567, 0
      %v648 = vsel %vm643, %v568, 0
      %v651 = vsel %vm643, %v569, 0
      %v654 = vsel %vm643, %v570, 0
      %v657 = vsel %vm643, %v571, 0
      %v660 = vsel %vm643, %v572, 0
      %v663 = vsel %vm643, %v573, 0
      %v666 = vsel %vm643, %v574, 0
      %v669 = vsel %vm643, %v575, 0
      %v672 = vsel %vm643, %v576, 0
      %v675 = vsel %vm643, %v577, 0
      %v678 = vsel %vm643, %v578, 0
      %v681 = vsel %vm643, %v579, 0
      %v684 = vsel %vm643, %v580, 0
      %v687 = vsel %vm643, %v581, 0
      %v690 = vsel %vm643, %v582, 0
      %v693 = vsel %vm643, %v583, 0
      %v696 = vsel %vm643, %v584, 0
      %v699 = vsel %vm643, %v585, 0
      %v702 = vsel %vm643, %v586, 0
      %v705 = vsel %vm643, %v587, 0
      %v708 = vsel %vm643, %v588, 0
      %v711 = vsel %vm643, %v589, 0
      %v714 = vsel %vm643, %v590, 0
      %v717 = vsel %vm643, %v591, 0
      %v720 = vsel %vm643, %v592, 0
      %v723 = vsel %vm643, %v593, 0
      %v726 = vsel %vm643, %v594, 0
      %v729 = vsel %vm643, %v595, 0
      %v732 = vsel %vm643, %v596, 0
      %v735 = vsel %vm643, %v597, 0
      %v738 = vsel %vm643, %v598, 0
      %v741 = vsel %vm643, %v599, 0
      %v744 = vsel %vm643, %v600, 0
      %v747 = vsel %vm643, %v601, 0
      %v750 = vsel %vm643, %v602, 0
      %v753 = vsel %vm643, %v603, 0
      %v756 = vsel %vm643, %v604, 0
      %v759 = vsel %vm643, %v605, 0
      %v762 = vsel %vm643, %v606, 0
      %v765 = vsel %vm643, %v607, 0
      %v768 = vsel %vm643, %v608, 0
      %v771 = vsel %vm643, %v609, 0
      %v774 = vsel %vm643, %v610, 0
      %v777 = vsel %vm643, %v611, 0
      %v780 = vsel %vm643, %v612, 0
      %v783 = vsel %vm643, %v613, 0
      %v786 = vsel %vm643, %v614, 0
      %v789 = vsel %vm643, %v615, 0
      %v792 = vsel %vm643, %v616, 0
      %v795 = vsel %vm643, %v617, 0
      %v798 = vsel %vm643, %v618, 0
      %v801 = vsel %vm643, %v619, 0
      %v804 = vsel %vm643, %v620, 0
      %v807 = vsel %vm643, %v621, 0
      %v810 = vsel %vm643, %v622, 0
      %v813 = vsel %vm643, %v623, 0
      %v816 = vsel %vm643, %v624, 0
      %v819 = vsel %vm643, %v625, 0
      %v822 = vsel %vm643, %v626, 0
      %v825 = vsel %vm643, %v627, 0
      %v828 = vsel %vm643, %v628, 0
      %v831 = vsel %vm643, %v629, 0
      %v834 = vsel %vm643, %v630, 0
      %836 = vmatpush.bf16.msra.mxu0 0
      %837 = vmatpush.bf16.msra.mxu0 0
      %838 = vmatpush.bf16.msra.mxu0 0
      %839 = vmatpush.bf16.msra.mxu0 0
      %840 = vmatpush.bf16.msra.mxu0 0
      %841 = vmatpush.bf16.msra.mxu0 0
      %842 = vmatpush.bf16.msra.mxu0 %v640
      %843 = vmatpush.bf16.msra.mxu0 %v639
      %844 = vmatmul.bf16.gmra.mxu0 %v645
      %v845 = vpop.f32.mrf.mxu0
      %v846 = vadd.f32 %v309, %v845
      %v847 = vpop.f32.mrf.mxu0
      %v848 = vadd.f32 %v309, %v847
      %849 = vmatmul.bf16.gmra.mxu0 %v648
      %v850 = vpop.f32.mrf.mxu0
      %v851 = vadd.f32 %v309, %v850
      %v852 = vpop.f32.mrf.mxu0
      %v853 = vadd.f32 %v309, %v852
      %854 = vmatmul.bf16.gmra.mxu0 %v651
      %v855 = vpop.f32.mrf.mxu0
      %v856 = vadd.f32 %v309, %v855
      %v857 = vpop.f32.mrf.mxu0
      %v858 = vadd.f32 %v309, %v857
      %859 = vmatmul.bf16.gmra.mxu0 %v654
      %v860 = vpop.f32.mrf.mxu0
      %v861 = vadd.f32 %v309, %v860
      %v862 = vpop.f32.mrf.mxu0
      %v863 = vadd.f32 %v309, %v862
      %864 = vmatmul.bf16.gmra.mxu0 %v657
      %v865 = vpop.f32.mrf.mxu0
      %v866 = vadd.f32 %v309, %v865
      %v867 = vpop.f32.mrf.mxu0
      %v868 = vadd.f32 %v309, %v867
      %869 = vmatmul.bf16.gmra.mxu0 %v660
      %v870 = vpop.f32.mrf.mxu0
      %v871 = vadd.f32 %v309, %v870
      %v872 = vpop.f32.mrf.mxu0
      %v873 = vadd.f32 %v309, %v872
      %874 = vmatmul.bf16.gmra.mxu0 %v663
      %v875 = vpop.f32.mrf.mxu0
      %v876 = vadd.f32 %v309, %v875
      %v877 = vpop.f32.mrf.mxu0
      %v878 = vadd.f32 %v309, %v877
      %879 = vmatmul.bf16.gmra.mxu0 %v666
      %v880 = vpop.f32.mrf.mxu0
      %v881 = vadd.f32 %v309, %v880
      %v882 = vpop.f32.mrf.mxu0
      %v883 = vadd.f32 %v309, %v882
      %884 = vmatmul.bf16.gmra.mxu0 %v669
      %v885 = vpop.f32.mrf.mxu0
      %v886 = vadd.f32 %v309, %v885
      %v887 = vpop.f32.mrf.mxu0
      %v888 = vadd.f32 %v309, %v887
      %889 = vmatmul.bf16.gmra.mxu0 %v672
      %v890 = vpop.f32.mrf.mxu0
      %v891 = vadd.f32 %v309, %v890
      %v892 = vpop.f32.mrf.mxu0
      %v893 = vadd.f32 %v309, %v892
      %894 = vmatmul.bf16.gmra.mxu0 %v675
      %v895 = vpop.f32.mrf.mxu0
      %v896 = vadd.f32 %v309, %v895
      %v897 = vpop.f32.mrf.mxu0
      %v898 = vadd.f32 %v309, %v897
      %899 = vmatmul.bf16.gmra.mxu0 %v678
      %v900 = vpop.f32.mrf.mxu0
      %v901 = vadd.f32 %v309, %v900
      %v902 = vpop.f32.mrf.mxu0
      %v903 = vadd.f32 %v309, %v902
      %904 = vmatmul.bf16.gmra.mxu0 %v681
      %v905 = vpop.f32.mrf.mxu0
      %v906 = vadd.f32 %v309, %v905
      %v907 = vpop.f32.mrf.mxu0
      %v908 = vadd.f32 %v309, %v907
      %909 = vmatmul.bf16.gmra.mxu0 %v684
      %v910 = vpop.f32.mrf.mxu0
      %v911 = vadd.f32 %v309, %v910
      %v912 = vpop.f32.mrf.mxu0
      %v913 = vadd.f32 %v309, %v912
      %914 = vmatmul.bf16.gmra.mxu0 %v687
      %v915 = vpop.f32.mrf.mxu0
      %v916 = vadd.f32 %v309, %v915
      %v917 = vpop.f32.mrf.mxu0
      %v918 = vadd.f32 %v309, %v917
      %919 = vmatmul.bf16.gmra.mxu0 %v690
      %v920 = vpop.f32.mrf.mxu0
      %v921 = vadd.f32 %v309, %v920
      %v922 = vpop.f32.mrf.mxu0
      %v923 = vadd.f32 %v309, %v922
      %924 = vmatmul.bf16.gmra.mxu0 %v693
      %v925 = vpop.f32.mrf.mxu0
      %v926 = vadd.f32 %v309, %v925
      %v927 = vpop.f32.mrf.mxu0
      %v928 = vadd.f32 %v309, %v927
      %929 = vmatmul.bf16.gmra.mxu0 %v696
      %v930 = vpop.f32.mrf.mxu0
      %v931 = vadd.f32 %v309, %v930
      %v932 = vpop.f32.mrf.mxu0
      %v933 = vadd.f32 %v309, %v932
      %934 = vmatmul.bf16.gmra.mxu0 %v699
      %v935 = vpop.f32.mrf.mxu0
      %v936 = vadd.f32 %v309, %v935
      %v937 = vpop.f32.mrf.mxu0
      %v938 = vadd.f32 %v309, %v937
      %939 = vmatmul.bf16.gmra.mxu0 %v702
      %v940 = vpop.f32.mrf.mxu0
      %v941 = vadd.f32 %v309, %v940
      %v942 = vpop.f32.mrf.mxu0
      %v943 = vadd.f32 %v309, %v942
      %944 = vmatmul.bf16.gmra.mxu0 %v705
      %v945 = vpop.f32.mrf.mxu0
      %v946 = vadd.f32 %v309, %v945
      %v947 = vpop.f32.mrf.mxu0
      %v948 = vadd.f32 %v309, %v947
      %949 = vmatmul.bf16.gmra.mxu0 %v708
      %v950 = vpop.f32.mrf.mxu0
      %v951 = vadd.f32 %v309, %v950
      %v952 = vpop.f32.mrf.mxu0
      %v953 = vadd.f32 %v309, %v952
      %954 = vmatmul.bf16.gmra.mxu0 %v711
      %v955 = vpop.f32.mrf.mxu0
      %v956 = vadd.f32 %v309, %v955
      %v957 = vpop.f32.mrf.mxu0
      %v958 = vadd.f32 %v309, %v957
      %959 = vmatmul.bf16.gmra.mxu0 %v714
      %v960 = vpop.f32.mrf.mxu0
      %v961 = vadd.f32 %v309, %v960
      %v962 = vpop.f32.mrf.mxu0
      %v963 = vadd.f32 %v309, %v962
      %964 = vmatmul.bf16.gmra.mxu0 %v717
      %v965 = vpop.f32.mrf.mxu0
      %v966 = vadd.f32 %v309, %v965
      %v967 = vpop.f32.mrf.mxu0
      %v968 = vadd.f32 %v309, %v967
      %969 = vmatmul.bf16.gmra.mxu0 %v720
      %v970 = vpop.f32.mrf.mxu0
      %v971 = vadd.f32 %v309, %v970
      %v972 = vpop.f32.mrf.mxu0
      %v973 = vadd.f32 %v309, %v972
      %974 = vmatmul.bf16.gmra.mxu0 %v723
      %v975 = vpop.f32.mrf.mxu0
      %v976 = vadd.f32 %v309, %v975
      %v977 = vpop.f32.mrf.mxu0
      %v978 = vadd.f32 %v309, %v977
      %979 = vmatmul.bf16.gmra.mxu0 %v726
      %v980 = vpop.f32.mrf.mxu0
      %v981 = vadd.f32 %v309, %v980
      %v982 = vpop.f32.mrf.mxu0
      %v983 = vadd.f32 %v309, %v982
      %984 = vmatmul.bf16.gmra.mxu0 %v729
      %v985 = vpop.f32.mrf.mxu0
      %v986 = vadd.f32 %v309, %v985
      %v987 = vpop.f32.mrf.mxu0
      %v988 = vadd.f32 %v309, %v987
      %989 = vmatmul.bf16.gmra.mxu0 %v732
      %v990 = vpop.f32.mrf.mxu0
      %v991 = vadd.f32 %v309, %v990
      %v992 = vpop.f32.mrf.mxu0
      %v993 = vadd.f32 %v309, %v992
      %994 = vmatmul.bf16.gmra.mxu0 %v735
      %v995 = vpop.f32.mrf.mxu0
      %v996 = vadd.f32 %v309, %v995
      %v997 = vpop.f32.mrf.mxu0
      %v998 = vadd.f32 %v309, %v997
      %999 = vmatmul.bf16.gmra.mxu0 %v738
      %v1000 = vpop.f32.mrf.mxu0
      %v1001 = vadd.f32 %v309, %v1000
      %v1002 = vpop.f32.mrf.mxu0
      %v1003 = vadd.f32 %v309, %v1002
      %1004 = vmatmul.bf16.gmra.mxu0 %v741
      %v1005 = vpop.f32.mrf.mxu0
      %v1006 = vadd.f32 %v309, %v1005
      %v1007 = vpop.f32.mrf.mxu0
      %v1008 = vadd.f32 %v309, %v1007
      %1009 = vmatmul.bf16.gmra.mxu0 %v744
      %v1010 = vpop.f32.mrf.mxu0
      %v1011 = vadd.f32 %v309, %v1010
      %v1012 = vpop.f32.mrf.mxu0
      %v1013 = vadd.f32 %v309, %v1012
      %1014 = vmatmul.bf16.gmra.mxu0 %v747
      %v1015 = vpop.f32.mrf.mxu0
      %v1016 = vadd.f32 %v309, %v1015
      %v1017 = vpop.f32.mrf.mxu0
      %v1018 = vadd.f32 %v309, %v1017
      %1019 = vmatmul.bf16.gmra.mxu0 %v750
      %v1020 = vpop.f32.mrf.mxu0
      %v1021 = vadd.f32 %v309, %v1020
      %v1022 = vpop.f32.mrf.mxu0
      %v1023 = vadd.f32 %v309, %v1022
      %1024 = vmatmul.bf16.gmra.mxu0 %v753
      %v1025 = vpop.f32.mrf.mxu0
      %v1026 = vadd.f32 %v309, %v1025
      %v1027 = vpop.f32.mrf.mxu0
      %v1028 = vadd.f32 %v309, %v1027
      %1029 = vmatmul.bf16.gmra.mxu0 %v756
      %v1030 = vpop.f32.mrf.mxu0
      %v1031 = vadd.f32 %v309, %v1030
      %v1032 = vpop.f32.mrf.mxu0
      %v1033 = vadd.f32 %v309, %v1032
      %1034 = vmatmul.bf16.gmra.mxu0 %v759
      %v1035 = vpop.f32.mrf.mxu0
      %v1036 = vadd.f32 %v309, %v1035
      %v1037 = vpop.f32.mrf.mxu0
      %v1038 = vadd.f32 %v309, %v1037
      %1039 = vmatmul.bf16.gmra.mxu0 %v762
      %v1040 = vpop.f32.mrf.mxu0
      %v1041 = vadd.f32 %v309, %v1040
      %v1042 = vpop.f32.mrf.mxu0
      %v1043 = vadd.f32 %v309, %v1042
      %1044 = vmatmul.bf16.gmra.mxu0 %v765
      %v1045 = vpop.f32.mrf.mxu0
      %v1046 = vadd.f32 %v309, %v1045
      %v1047 = vpop.f32.mrf.mxu0
      %v1048 = vadd.f32 %v309, %v1047
      %1049 = vmatmul.bf16.gmra.mxu0 %v768
      %v1050 = vpop.f32.mrf.mxu0
      %v1051 = vadd.f32 %v309, %v1050
      %v1052 = vpop.f32.mrf.mxu0
      %v1053 = vadd.f32 %v309, %v1052
      %1054 = vmatmul.bf16.gmra.mxu0 %v771
      %v1055 = vpop.f32.mrf.mxu0
      %v1056 = vadd.f32 %v309, %v1055
      %v1057 = vpop.f32.mrf.mxu0
      %v1058 = vadd.f32 %v309, %v1057
      %1059 = vmatmul.bf16.gmra.mxu0 %v774
      %v1060 = vpop.f32.mrf.mxu0
      %v1061 = vadd.f32 %v309, %v1060
      %v1062 = vpop.f32.mrf.mxu0
      %v1063 = vadd.f32 %v309, %v1062
      %1064 = vmatmul.bf16.gmra.mxu0 %v777
      %v1065 = vpop.f32.mrf.mxu0
      %v1066 = vadd.f32 %v309, %v1065
      %v1067 = vpop.f32.mrf.mxu0
      %v1068 = vadd.f32 %v309, %v1067
      %1069 = vmatmul.bf16.gmra.mxu0 %v780
      %v1070 = vpop.f32.mrf.mxu0
      %v1071 = vadd.f32 %v309, %v1070
      %v1072 = vpop.f32.mrf.mxu0
      %v1073 = vadd.f32 %v309, %v1072
      %1074 = vmatmul.bf16.gmra.mxu0 %v783
      %v1075 = vpop.f32.mrf.mxu0
      %v1076 = vadd.f32 %v309, %v1075
      %v1077 = vpop.f32.mrf.mxu0
      %v1078 = vadd.f32 %v309, %v1077
      %1079 = vmatmul.bf16.gmra.mxu0 %v786
      %v1080 = vpop.f32.mrf.mxu0
      %v1081 = vadd.f32 %v309, %v1080
      %v1082 = vpop.f32.mrf.mxu0
      %v1083 = vadd.f32 %v309, %v1082
      %1084 = vmatmul.bf16.gmra.mxu0 %v789
      %v1085 = vpop.f32.mrf.mxu0
      %v1086 = vadd.f32 %v309, %v1085
      %v1087 = vpop.f32.mrf.mxu0
      %v1088 = vadd.f32 %v309, %v1087
      %1089 = vmatmul.bf16.gmra.mxu0 %v792
      %v1090 = vpop.f32.mrf.mxu0
      %v1091 = vadd.f32 %v309, %v1090
      %v1092 = vpop.f32.mrf.mxu0
      %v1093 = vadd.f32 %v309, %v1092
      %1094 = vmatmul.bf16.gmra.mxu0 %v795
      %v1095 = vpop.f32.mrf.mxu0
      %v1096 = vadd.f32 %v309, %v1095
      %v1097 = vpop.f32.mrf.mxu0
      %v1098 = vadd.f32 %v309, %v1097
      %1099 = vmatmul.bf16.gmra.mxu0 %v798
      %v1100 = vpop.f32.mrf.mxu0
      %v1101 = vadd.f32 %v309, %v1100
      %v1102 = vpop.f32.mrf.mxu0
      %v1103 = vadd.f32 %v309, %v1102
      %1104 = vmatmul.bf16.gmra.mxu0 %v801
      %v1105 = vpop.f32.mrf.mxu0
      %v1106 = vadd.f32 %v309, %v1105
      %v1107 = vpop.f32.mrf.mxu0
      %v1108 = vadd.f32 %v309, %v1107
      %1109 = vmatmul.bf16.gmra.mxu0 %v804
      %v1110 = vpop.f32.mrf.mxu0
      %v1111 = vadd.f32 %v309, %v1110
      %v1112 = vpop.f32.mrf.mxu0
      %v1113 = vadd.f32 %v309, %v1112
      %1114 = vmatmul.bf16.gmra.mxu0 %v807
      %v1115 = vpop.f32.mrf.mxu0
      %v1116 = vadd.f32 %v309, %v1115
      %v1117 = vpop.f32.mrf.mxu0
      %v1118 = vadd.f32 %v309, %v1117
      %1119 = vmatmul.bf16.gmra.mxu0 %v810
      %v1120 = vpop.f32.mrf.mxu0
      %v1121 = vadd.f32 %v309, %v1120
      %v1122 = vpop.f32.mrf.mxu0
      %v1123 = vadd.f32 %v309, %v1122
      %1124 = vmatmul.bf16.gmra.mxu0 %v813
      %v1125 = vpop.f32.mrf.mxu0
      %v1126 = vadd.f32 %v309, %v1125
      %v1127 = vpop.f32.mrf.mxu0
      %v1128 = vadd.f32 %v309, %v1127
      %1129 = vmatmul.bf16.gmra.mxu0 %v816
      %v1130 = vpop.f32.mrf.mxu0
      %v1131 = vadd.f32 %v309, %v1130
      %v1132 = vpop.f32.mrf.mxu0
      %v1133 = vadd.f32 %v309, %v1132
      %1134 = vmatmul.bf16.gmra.mxu0 %v819
      %v1135 = vpop.f32.mrf.mxu0
      %v1136 = vadd.f32 %v309, %v1135
      %v1137 = vpop.f32.mrf.mxu0
      %v1138 = vadd.f32 %v309, %v1137
      %1139 = vmatmul.bf16.gmra.mxu0 %v822
      %v1140 = vpop.f32.mrf.mxu0
      %v1141 = vadd.f32 %v309, %v1140
      %v1142 = vpop.f32.mrf.mxu0
      %v1143 = vadd.f32 %v309, %v1142
      %1144 = vmatmul.bf16.gmra.mxu0 %v825
      %v1145 = vpop.f32.mrf.mxu0
      %v1146 = vadd.f32 %v309, %v1145
      %v1147 = vpop.f32.mrf.mxu0
      %v1148 = vadd.f32 %v309, %v1147
      %1149 = vmatmul.bf16.gmra.mxu0 %v828
      %v1150 = vpop.f32.mrf.mxu0
      %v1151 = vadd.f32 %v309, %v1150
      %v1152 = vpop.f32.mrf.mxu0
      %v1153 = vadd.f32 %v309, %v1152
      %1154 = vmatmul.bf16.gmra.mxu0 %v831
      %v1155 = vpop.f32.mrf.mxu0
      %v1156 = vadd.f32 %v309, %v1155
      %v1157 = vpop.f32.mrf.mxu0
      %v1158 = vadd.f32 %v309, %v1157
      %1159 = vmatmul.bf16.gmra.mxu0 %v834
      %v1160 = vpop.f32.mrf.mxu0
      %v1161 = vadd.f32 %v309, %v1160
      %v1162 = vpop.f32.mrf.mxu0
      %v1163 = vadd.f32 %v309, %v1162
      %1164 = vdwg.mxu0
      %v1165 = vmax.f32 %v846, 0.0
      %v1166 = vmax.f32 %v848, 0.0
      %v1167 = vmax.f32 %v851, 0.0
      %v1168 = vmax.f32 %v853, 0.0
      %v1169 = vmax.f32 %v856, 0.0
      %v1170 = vmax.f32 %v858, 0.0
      %v1171 = vmax.f32 %v861, 0.0
      %v1172 = vmax.f32 %v863, 0.0
      %v1173 = vmax.f32 %v866, 0.0
      %v1174 = vmax.f32 %v868, 0.0
      %v1175 = vmax.f32 %v871, 0.0
      %v1176 = vmax.f32 %v873, 0.0
      %v1177 = vmax.f32 %v876, 0.0
      %v1178 = vmax.f32 %v878, 0.0
      %v1179 = vmax.f32 %v881, 0.0
      %v1180 = vmax.f32 %v883, 0.0
      %v1181 = vmax.f32 %v886, 0.0
      %v1182 = vmax.f32 %v888, 0.0
      %v1183 = vmax.f32 %v891, 0.0
      %v1184 = vmax.f32 %v893, 0.0
      %v1185 = vmax.f32 %v896, 0.0
      %v1186 = vmax.f32 %v898, 0.0
      %v1187 = vmax.f32 %v901, 0.0
      %v1188 = vmax.f32 %v903, 0.0
      %v1189 = vmax.f32 %v906, 0.0
      %v1190 = vmax.f32 %v908, 0.0
      %v1191 = vmax.f32 %v911, 0.0
      %v1192 = vmax.f32 %v913, 0.0
      %v1193 = vmax.f32 %v916, 0.0
      %v1194 = vmax.f32 %v918, 0.0
      %v1195 = vmax.f32 %v921, 0.0
      %v1196 = vmax.f32 %v923, 0.0
      %v1197 = vmax.f32 %v926, 0.0
      %v1198 = vmax.f32 %v928, 0.0
      %v1199 = vmax.f32 %v931, 0.0
      %v1200 = vmax.f32 %v933, 0.0
      %v1201 = vmax.f32 %v936, 0.0
      %v1202 = vmax.f32 %v938, 0.0
      %v1203 = vmax.f32 %v941, 0.0
      %v1204 = vmax.f32 %v943, 0.0
      %v1205 = vmax.f32 %v946, 0.0
      %v1206 = vmax.f32 %v948, 0.0
      %v1207 = vmax.f32 %v951, 0.0
      %v1208 = vmax.f32 %v953, 0.0
      %v1209 = vmax.f32 %v956, 0.0
      %v1210 = vmax.f32 %v958, 0.0
      %v1211 = vmax.f32 %v961, 0.0
      %v1212 = vmax.f32 %v963, 0.0
      %v1213 = vmax.f32 %v966, 0.0
      %v1214 = vmax.f32 %v968, 0.0
      %v1215 = vmax.f32 %v971, 0.0
      %v1216 = vmax.f32 %v973, 0.0
      %v1217 = vmax.f32 %v976, 0.0
      %v1218 = vmax.f32 %v978, 0.0
      %v1219 = vmax.f32 %v981, 0.0
      %v1220 = vmax.f32 %v983, 0.0
      %v1221 = vmax.f32 %v986, 0.0
      %v1222 = vmax.f32 %v988, 0.0
      %v1223 = vmax.f32 %v991, 0.0
      %v1224 = vmax.f32 %v993, 0.0
      %v1225 = vmax.f32 %v996, 0.0
      %v1226 = vmax.f32 %v998, 0.0
      %v1227 = vmax.f32 %v1001, 0.0
      %v1228 = vmax.f32 %v1003, 0.0
      %v1229 = vmax.f32 %v1006, 0.0
      %v1230 = vmax.f32 %v1008, 0.0
      %v1231 = vmax.f32 %v1011, 0.0
      %v1232 = vmax.f32 %v1013, 0.0
      %v1233 = vmax.f32 %v1016, 0.0
      %v1234 = vmax.f32 %v1018, 0.0
      %v1235 = vmax.f32 %v1021, 0.0
      %v1236 = vmax.f32 %v1023, 0.0
      %v1237 = vmax.f32 %v1026, 0.0
      %v1238 = vmax.f32 %v1028, 0.0
      %v1239 = vmax.f32 %v1031, 0.0
      %v1240 = vmax.f32 %v1033, 0.0
      %v1241 = vmax.f32 %v1036, 0.0
      %v1242 = vmax.f32 %v1038, 0.0
      %v1243 = vmax.f32 %v1041, 0.0
      %v1244 = vmax.f32 %v1043, 0.0
      %v1245 = vmax.f32 %v1046, 0.0
      %v1246 = vmax.f32 %v1048, 0.0
      %v1247 = vmax.f32 %v1051, 0.0
      %v1248 = vmax.f32 %v1053, 0.0
      %v1249 = vmax.f32 %v1056, 0.0
      %v1250 = vmax.f32 %v1058, 0.0
      %v1251 = vmax.f32 %v1061, 0.0
      %v1252 = vmax.f32 %v1063, 0.0
      %v1253 = vmax.f32 %v1066, 0.0
      %v1254 = vmax.f32 %v1068, 0.0
      %v1255 = vmax.f32 %v1071, 0.0
      %v1256 = vmax.f32 %v1073, 0.0
      %v1257 = vmax.f32 %v1076, 0.0
      %v1258 = vmax.f32 %v1078, 0.0
      %v1259 = vmax.f32 %v1081, 0.0
      %v1260 = vmax.f32 %v1083, 0.0
      %v1261 = vmax.f32 %v1086, 0.0
      %v1262 = vmax.f32 %v1088, 0.0
      %v1263 = vmax.f32 %v1091, 0.0
      %v1264 = vmax.f32 %v1093, 0.0
      %v1265 = vmax.f32 %v1096, 0.0
      %v1266 = vmax.f32 %v1098, 0.0
      %v1267 = vmax.f32 %v1101, 0.0
      %v1268 = vmax.f32 %v1103, 0.0
      %v1269 = vmax.f32 %v1106, 0.0
      %v1270 = vmax.f32 %v1108, 0.0
      %v1271 = vmax.f32 %v1111, 0.0
      %v1272 = vmax.f32 %v1113, 0.0
      %v1273 = vmax.f32 %v1116, 0.0
      %v1274 = vmax.f32 %v1118, 0.0
      %v1275 = vmax.f32 %v1121, 0.0
      %v1276 = vmax.f32 %v1123, 0.0
      %v1277 = vmax.f32 %v1126, 0.0
      %v1278 = vmax.f32 %v1128, 0.0
      %v1279 = vmax.f32 %v1131, 0.0
      %v1280 = vmax.f32 %v1133, 0.0
      %v1281 = vmax.f32 %v1136, 0.0
      %v1282 = vmax.f32 %v1138, 0.0
      %v1283 = vmax.f32 %v1141, 0.0
      %v1284 = vmax.f32 %v1143, 0.0
      %v1285 = vmax.f32 %v1146, 0.0
      %v1286 = vmax.f32 %v1148, 0.0
      %v1287 = vmax.f32 %v1151, 0.0
      %v1288 = vmax.f32 %v1153, 0.0
      %v1289 = vmax.f32 %v1156, 0.0
      %v1290 = vmax.f32 %v1158, 0.0
      %v1291 = vmax.f32 %v1161, 0.0
      %v1292 = vmax.f32 %v1163, 0.0
      %v1293 = vmax.f32 %v1165, %v1197
      %v1294 = vmax.f32 %v1166, %v1198
      %v1295 = vmax.f32 %v1167, %v1199
      %v1296 = vmax.f32 %v1168, %v1200
      %v1297 = vmax.f32 %v1169, %v1201
      %v1298 = vmax.f32 %v1170, %v1202
      %v1299 = vmax.f32 %v1171, %v1203
      %v1300 = vmax.f32 %v1172, %v1204
      %v1301 = vmax.f32 %v1173, %v1205
      %v1302 = vmax.f32 %v1174, %v1206
      %v1303 = vmax.f32 %v1175, %v1207
      %v1304 = vmax.f32 %v1176, %v1208
      %v1305 = vmax.f32 %v1177, %v1209
      %v1306 = vmax.f32 %v1178, %v1210
      %v1307 = vmax.f32 %v1179, %v1211
      %v1308 = vmax.f32 %v1180, %v1212
      %v1309 = vmax.f32 %v1181, %v1213
      %v1310 = vmax.f32 %v1182, %v1214
      %v1311 = vmax.f32 %v1183, %v1215
      %v1312 = vmax.f32 %v1184, %v1216
      %v1313 = vmax.f32 %v1185, %v1217
      %v1314 = vmax.f32 %v1186, %v1218
      %v1315 = vmax.f32 %v1187, %v1219
      %v1316 = vmax.f32 %v1188, %v1220
      %v1317 = vmax.f32 %v1189, %v1221
      %v1318 = vmax.f32 %v1190, %v1222
      %v1319 = vmax.f32 %v1191, %v1223
      %v1320 = vmax.f32 %v1192, %v1224
      %v1321 = vmax.f32 %v1193, %v1225
      %v1322 = vmax.f32 %v1194, %v1226
      %v1323 = vmax.f32 %v1195, %v1227
      %v1324 = vmax.f32 %v1196, %v1228
      %v1325 = vmax.f32 %v1229, %v1261
      %v1326 = vmax.f32 %v1230, %v1262
      %v1327 = vmax.f32 %v1231, %v1263
      %v1328 = vmax.f32 %v1232, %v1264
      %v1329 = vmax.f32 %v1233, %v1265
      %v1330 = vmax.f32 %v1234, %v1266
      %v1331 = vmax.f32 %v1235, %v1267
      %v1332 = vmax.f32 %v1236, %v1268
      %v1333 = vmax.f32 %v1237, %v1269
      %v1334 = vmax.f32 %v1238, %v1270
      %v1335 = vmax.f32 %v1239, %v1271
      %v1336 = vmax.f32 %v1240, %v1272
      %v1337 = vmax.f32 %v1241, %v1273
      %v1338 = vmax.f32 %v1242, %v1274
      %v1339 = vmax.f32 %v1243, %v1275
      %v1340 = vmax.f32 %v1244, %v1276
      %v1341 = vmax.f32 %v1245, %v1277
      %v1342 = vmax.f32 %v1246, %v1278
      %v1343 = vmax.f32 %v1247, %v1279
      %v1344 = vmax.f32 %v1248, %v1280
      %v1345 = vmax.f32 %v1249, %v1281
      %v1346 = vmax.f32 %v1250, %v1282
      %v1347 = vmax.f32 %v1251, %v1283
      %v1348 = vmax.f32 %v1252, %v1284
      %v1349 = vmax.f32 %v1253, %v1285
      %v1350 = vmax.f32 %v1254, %v1286
      %v1351 = vmax.f32 %v1255, %v1287
      %v1352 = vmax.f32 %v1256, %v1288
      %v1353 = vmax.f32 %v1257, %v1289
      %v1354 = vmax.f32 %v1258, %v1290
      %v1355 = vmax.f32 %v1259, %v1291
      %v1356 = vmax.f32 %v1260, %v1292
      %v1357 = vmax.f32 %v1293, %v1325
      %v1358 = vmax.f32 %v1294, %v1326
      %v1359 = vmax.f32 %v1295, %v1327
      %v1360 = vmax.f32 %v1296, %v1328
      %v1361 = vmax.f32 %v1297, %v1329
      %v1362 = vmax.f32 %v1298, %v1330
      %v1363 = vmax.f32 %v1299, %v1331
      %v1364 = vmax.f32 %v1300, %v1332
      %v1365 = vmax.f32 %v1301, %v1333
      %v1366 = vmax.f32 %v1302, %v1334
      %v1367 = vmax.f32 %v1303, %v1335
      %v1368 = vmax.f32 %v1304, %v1336
      %v1369 = vmax.f32 %v1305, %v1337
      %v1370 = vmax.f32 %v1306, %v1338
      %v1371 = vmax.f32 %v1307, %v1339
      %v1372 = vmax.f32 %v1308, %v1340
      %v1373 = vmax.f32 %v1309, %v1341
      %v1374 = vmax.f32 %v1310, %v1342
      %v1375 = vmax.f32 %v1311, %v1343
      %v1376 = vmax.f32 %v1312, %v1344
      %v1377 = vmax.f32 %v1313, %v1345
      %v1378 = vmax.f32 %v1314, %v1346
      %v1379 = vmax.f32 %v1315, %v1347
      %v1380 = vmax.f32 %v1316, %v1348
      %v1381 = vmax.f32 %v1317, %v1349
      %v1382 = vmax.f32 %v1318, %v1350
      %v1383 = vmax.f32 %v1319, %v1351
      %v1384 = vmax.f32 %v1320, %v1352
      %v1385 = vmax.f32 %v1321, %v1353
      %v1386 = vmax.f32 %v1322, %v1354
      %v1387 = vmax.f32 %v1323, %v1355
      %v1388 = vmax.f32 %v1324, %v1356
      %v1389 = vpack.c.bf16 %v1357, %v1357
      %v1390 = vpack.c.bf16 %v1358, %v1358
      %v1391 = vpack.c.bf16 %v1359, %v1359
      %v1392 = vpack.c.bf16 %v1360, %v1360
      %v1393 = vpack.c.bf16 %v1361, %v1361
      %v1394 = vpack.c.bf16 %v1362, %v1362
      %v1395 = vpack.c.bf16 %v1363, %v1363
      %v1396 = vpack.c.bf16 %v1364, %v1364
      %v1397 = vpack.c.bf16 %v1365, %v1365
      %v1398 = vpack.c.bf16 %v1366, %v1366
      %v1399 = vpack.c.bf16 %v1367, %v1367
      %v1400 = vpack.c.bf16 %v1368, %v1368
      %v1401 = vpack.c.bf16 %v1369, %v1369
      %v1402 = vpack.c.bf16 %v1370, %v1370
      %v1403 = vpack.c.bf16 %v1371, %v1371
      %v1404 = vpack.c.bf16 %v1372, %v1372
      %v1405 = vpack.c.bf16 %v1373, %v1373
      %v1406 = vpack.c.bf16 %v1374, %v1374
      %v1407 = vpack.c.bf16 %v1375, %v1375
      %v1408 = vpack.c.bf16 %v1376, %v1376
      %v1409 = vpack.c.bf16 %v1377, %v1377
      %v1410 = vpack.c.bf16 %v1378, %v1378
      %v1411 = vpack.c.bf16 %v1379, %v1379
      %v1412 = vpack.c.bf16 %v1380, %v1380
      %v1413 = vpack.c.bf16 %v1381, %v1381
      %v1414 = vpack.c.bf16 %v1382, %v1382
      %v1415 = vpack.c.bf16 %v1383, %v1383
      %v1416 = vpack.c.bf16 %v1384, %v1384
      %v1417 = vpack.c.bf16 %v1385, %v1385
      %v1418 = vpack.c.bf16 %v1386, %v1386
      %v1419 = vpack.c.bf16 %v1387, %v1387
      %v1420 = vpack.c.bf16 %v1388, %v1388
      %1421 = vst [vmem:[%s172] sm:$0xf] %v1389
      %1422 = vst [vmem:[%s172 + $0x4] sm:$0xf] %v1390
      %1423 = vst [vmem:[%s172 + $0x8] sm:$0xf] %v1391
      %1424 = vst [vmem:[%s172 + $0xc] sm:$0xf] %v1392
      %1425 = vst [vmem:[%s172 + $0x10] sm:$0xf] %v1393
      %1426 = vst [vmem:[%s172 + $0x14] sm:$0xf] %v1394
      %1427 = vst [vmem:[%s172 + $0x18] sm:$0xf] %v1395
      %1428 = vst [vmem:[%s172 + $0x1c] sm:$0xf] %v1396
      %1429 = vst [vmem:[%s172 + $0x20] sm:$0xf] %v1397
      %1430 = vst [vmem:[%s172 + $0x24] sm:$0xf] %v1398
      %1431 = vst [vmem:[%s172 + $0x28] sm:$0xf] %v1399
      %1432 = vst [vmem:[%s172 + $0x2c] sm:$0xf] %v1400
      %1433 = vst [vmem:[%s172 + $0x30] sm:$0xf] %v1401
      %1434 = vst [vmem:[%s172 + $0x34] sm:$0xf] %v1402
      %1435 = vst [vmem:[%s172 + $0x38] sm:$0xf] %v1403
      %1436 = vst [vmem:[%s172 + $0x3c] sm:$0xf] %v1404
      %1437 = vst [vmem:[%s172 + $0x40] sm:$0xf] %v1405
      %1438 = vst [vmem:[%s172 + $0x44] sm:$0xf] %v1406
      %1439 = vst [vmem:[%s172 + $0x48] sm:$0xf] %v1407
      %1440 = vst [vmem:[%s172 + $0x4c] sm:$0xf] %v1408
      %1441 = vst [vmem:[%s172 + $0x50] sm:$0xf] %v1409
      %1442 = vst [vmem:[%s172 + $0x54] sm:$0xf] %v1410
      %1443 = vst [vmem:[%s172 + $0x58] sm:$0xf] %v1411
      %1444 = vst [vmem:[%s172 + $0x5c] sm:$0xf] %v1412
      %1445 = vst [vmem:[%s172 + $0x60] sm:$0xf] %v1413
      %1446 = vst [vmem:[%s172 + $0x64] sm:$0xf] %v1414
      %1447 = vst [vmem:[%s172 + $0x68] sm:$0xf] %v1415
      %1448 = vst [vmem:[%s172 + $0x6c] sm:$0xf] %v1416
      %1449 = vst [vmem:[%s172 + $0x70] sm:$0xf] %v1417
      %1450 = vst [vmem:[%s172 + $0x74] sm:$0xf] %v1418
      %1451 = vst [vmem:[%s172 + $0x78] sm:$0xf] %v1419
      %1452 = vst [vmem:[%s172 + $0x7c] sm:$0xf] %v1420
      %s1453 = smul.u32 32, %s14
      %p1454 = scmp.lt.s32.totalorder %s1453, 63
      %s1455 = scalar_select %p1454, %s1453, 63
      %s1456 = smul.addr %s1455, 4
      %s1457 = scalar_lea.vmem %s3, %s1456
      // Predicated region
      $region33: #{net_forward.3} parent=31 // pred_check
        %p1458 = pneg %p100
      $region34: #{net_forward.3} parent=31 // pred_check_branch
        %1460 = sbr.rel (%p1458) target = $region36
      $region35: #{net_forward.3} parent=31 // pred_region
        %s1461 = smul.u32 32, %s14
      $region36: #{net_forward.3} parent=31 // pred_fallthru
        _
    $region32: #{net_forward.3} parent=5 // pred_fallthru
      _
    %p1462 = scmp.le.s32.totalorder 2, %s9
    // Predicated region
    $region37: #{net_forward.3} parent=5 // pred_check
      %p1463 = pneg %p1462
    $region38: #{net_forward.3} parent=5 // pred_check_branch
      %1465 = sbr.rel (%p1463) target = $region40
    $region39: #{net_forward.3} parent=5 // pred_region
      %s1466 = ssub.s32 %s9, 2
      // Predicated region
      $region41: #{net_forward.3} parent=39 // pred_check
        %p1467 = pneg %p106
      $region42: #{net_forward.3} parent=39 // pred_check_branch
        %1469 = sbr.rel (%p1467) target = $region44
      $region43: #{net_forward.3} parent=39 // pred_region
        %s1470 = smul.u32 32, %s15
        %p1471 = scmp.lt.s32.totalorder %s1470, 63
        %s1472 = scalar_select %p1471, %s1470, 63
        %s1473 = smul.addr %s1472, 4
        %s1474 = scalar_lea.vmem %s3, %s1473
      $region44: #{net_forward.3} parent=39 // pred_fallthru
        _
    $region40: #{net_forward.3} parent=5 // pred_fallthru
      _
  $region6: #{net_forward.3} parent=0 // loop_footer
    %s13 = sadd.s32 1, %s9
  $region7: #{net_forward.3} parent=0 // loop_footer_branch
    %8 = sbr.rel target = $region3
  $region8: #{net_forward.3} parent=0 // loop_exit
    _

// kernel: net_forward.4
$region0: #{net_forward.4}
  #allocation0 [shape = 'u32[]', space=smem, size = 0x4, offset = 0x4, fixed_abs, tag = 'smem constant byte address 0x4 - core index']
  #allocation1 [shape = 'u32[72,128]{1,0:T(1,128)}', space=vmem, size = 0x9000, scoped, tag = 'internal scratch']
  %s0 = inlined_call_operand.vmem [shape: bf16[256,160], index: 0, kind: input, shape index: {}]
  %s1 = inlined_call_operand.vmem [shape: bf16[160,128], index: 1, kind: input, shape index: {}]
  %s2 = inlined_call_operand.vmem [shape: f32[1,128], index: 2, kind: input, shape index: {}]
  %s3 = inlined_call_operand.vmem [shape: bf16[64,128], index: 3, kind: output, shape index: {}]
  %s4 = sld [smem:[#allocation0]]
  $region22: #{net_forward.4} parent=0
    _
  %s6 = ssub.s32 1, %s4
  %s7 = scalar_select 0, %s6, %s4
  // Predicated region
  $region2: #{net_forward.4} parent=0 // pred_check
    _
  $region3: #{net_forward.4} parent=0 // pred_check_branch
    %9 = sbr.rel (0) target = $region5
  $region4: #{net_forward.4} parent=0 // pred_region
    _
  $region5: #{net_forward.4} parent=0 // pred_fallthru
    _
  // Predicated region
  $region6: #{net_forward.4} parent=0 // pred_check
    _
  $region7: #{net_forward.4} parent=0 // pred_check_branch
    %11 = sbr.rel (0) target = $region9
  $region8: #{net_forward.4} parent=0 // pred_region
    _
  $region9: #{net_forward.4} parent=0 // pred_fallthru
    _
  // Predicated region
  $region10: #{net_forward.4} parent=0 // pred_check
    _
  $region11: #{net_forward.4} parent=0 // pred_check_branch
    %13 = sbr.rel (0) target = $region13
  $region12: #{net_forward.4} parent=0 // pred_region
    _
  $region13: #{net_forward.4} parent=0 // pred_fallthru
    _
  %v15 = vld [vmem:[%s0] sm:$0xff]
  %v16 = vld [vmem:[%s0 + $0x8] sm:$0xff]
  %v17 = vld [vmem:[%s0 + $0x10] sm:$0xff]
  %v18 = vld [vmem:[%s0 + $0x18] sm:$0xff]
  %v19 = vld [vmem:[%s0 + $0x20] sm:$0xff]
  %v20 = vld [vmem:[%s0 + $0x28] sm:$0xff]
  %v21 = vld [vmem:[%s0 + $0x30] sm:$0xff]
  %v22 = vld [vmem:[%s0 + $0x38] sm:$0xff]
  %v23 = vld [vmem:[%s0 + $0x40] sm:$0xff]
  %v24 = vld [vmem:[%s0 + $0x48] sm:$0xff]
  %v25 = vld [vmem:[%s0 + $0x50] sm:$0xff]
  %v26 = vld [vmem:[%s0 + $0x58] sm:$0xff]
  %v27 = vld [vmem:[%s0 + $0x60] sm:$0xff]
  %v28 = vld [vmem:[%s0 + $0x68] sm:$0xff]
  %v29 = vld [vmem:[%s0 + $0x70] sm:$0xff]
  %v30 = vld [vmem:[%s0 + $0x78] sm:$0xff]
  %v31 = vld [vmem:[%s0 + $0x80] sm:$0xff]
  %v32 = vld [vmem:[%s0 + $0x88] sm:$0xff]
  %v33 = vld [vmem:[%s0 + $0x90] sm:$0xff]
  %v34 = vld [vmem:[%s0 + $0x98] sm:$0xff]
  %v35 = vld [vmem:[%s0 + $0xa0] sm:$0xff]
  %v36 = vld [vmem:[%s0 + $0xa8] sm:$0xff]
  %v37 = vld [vmem:[%s0 + $0xb0] sm:$0xff]
  %v38 = vld [vmem:[%s0 + $0xb8] sm:$0xff]
  %v39 = vld [vmem:[%s0 + $0xc0] sm:$0xff]
  %v40 = vld [vmem:[%s0 + $0xc8] sm:$0xff]
  %v41 = vld [vmem:[%s0 + $0xd0] sm:$0xff]
  %v42 = vld [vmem:[%s0 + $0xd8] sm:$0xff]
  %v43 = vld [vmem:[%s0 + $0xe0] sm:$0xff]
  %v44 = vld [vmem:[%s0 + $0xe8] sm:$0xff]
  %v45 = vld [vmem:[%s0 + $0xf0] sm:$0xff]
  %v46 = vld [vmem:[%s0 + $0xf8] sm:$0xff]
  %v47 = vld [vmem:[%s1] sm:$0xf]
  %v48 = vld [vmem:[%s1 + $0x4] sm:$0xf]
  %v49 = vld [vmem:[%s1 + $0x8] sm:$0xf]
  %v50 = vld [vmem:[%s1 + $0xc] sm:$0xf]
  %v51 = vld [vmem:[%s1 + $0x10] sm:$0xf]
  %v52 = vld [vmem:[%s1 + $0x14] sm:$0xf]
  %v53 = vld [vmem:[%s1 + $0x18] sm:$0xf]
  %v54 = vld [vmem:[%s1 + $0x1c] sm:$0xf]
  %v55 = vld [vmem:[%s1 + $0x20] sm:$0xf]
  %v56 = vld [vmem:[%s1 + $0x24] sm:$0xf]
  %v57 = vld [vmem:[%s1 + $0x28] sm:$0xf]
  %v58 = vld [vmem:[%s1 + $0x2c] sm:$0xf]
  %v59 = vld [vmem:[%s1 + $0x30] sm:$0xf]
  %v60 = vld [vmem:[%s1 + $0x34] sm:$0xf]
  %v61 = vld [vmem:[%s1 + $0x38] sm:$0xf]
  %v62 = vld [vmem:[%s1 + $0x3c] sm:$0xf]
  %v63 = vld [vmem:[%s1 + $0x40] sm:$0xf]
  %v64 = vld [vmem:[%s1 + $0x44] sm:$0xf]
  %v65 = vld [vmem:[%s1 + $0x48] sm:$0xf]
  %v66 = vld [vmem:[%s1 + $0x4c] sm:$0xf]
  %v67 = vld [vmem:[%s2] sm:$0x1]
  %v69 = vperm.slane %v67, 0
  %v103 = vunpack.c.l.b16 %v15
  %v104 = vunpack.c.h.b16 %v15
  %v105 = vunpack.c.l.b16 %v16
  %v106 = vunpack.c.h.b16 %v16
  %v107 = vunpack.c.l.b16 %v17
  %v108 = vunpack.c.h.b16 %v17
  %v109 = vunpack.c.l.b16 %v18
  %v110 = vunpack.c.h.b16 %v18
  %v111 = vunpack.c.l.b16 %v19
  %v112 = vunpack.c.h.b16 %v19
  %v113 = vunpack.c.l.b16 %v20
  %v114 = vunpack.c.h.b16 %v20
  %v115 = vunpack.c.l.b16 %v21
  %v116 = vunpack.c.h.b16 %v21
  %v117 = vunpack.c.l.b16 %v22
  %v118 = vunpack.c.h.b16 %v22
  %v119 = vunpack.c.l.b16 %v23
  %v120 = vunpack.c.h.b16 %v23
  %v121 = vunpack.c.l.b16 %v24
  %v122 = vunpack.c.h.b16 %v24
  %v123 = vunpack.c.l.b16 %v25
  %v124 = vunpack.c.h.b16 %v25
  %v125 = vunpack.c.l.b16 %v26
  %v126 = vunpack.c.h.b16 %v26
  %v127 = vunpack.c.l.b16 %v27
  %v128 = vunpack.c.h.b16 %v27
  %v129 = vunpack.c.l.b16 %v28
  %v130 = vunpack.c.h.b16 %v28
  %v131 = vunpack.c.l.b16 %v29
  %v132 = vunpack.c.h.b16 %v29
  %v133 = vunpack.c.l.b16 %v30
  %v134 = vunpack.c.h.b16 %v30
  %v135 = vunpack.c.l.b16 %v31
  %v136 = vunpack.c.h.b16 %v31
  %v137 = vunpack.c.l.b16 %v32
  %v138 = vunpack.c.h.b16 %v32
  %v139 = vunpack.c.l.b16 %v33
  %v140 = vunpack.c.h.b16 %v33
  %v141 = vunpack.c.l.b16 %v34
  %v142 = vunpack.c.h.b16 %v34
  %v143 = vunpack.c.l.b16 %v35
  %v144 = vunpack.c.h.b16 %v35
  %v145 = vunpack.c.l.b16 %v36
  %v146 = vunpack.c.h.b16 %v36
  %v147 = vunpack.c.l.b16 %v37
  %v148 = vunpack.c.h.b16 %v37
  %v149 = vunpack.c.l.b16 %v38
  %v150 = vunpack.c.h.b16 %v38
  %v151 = vunpack.c.l.b16 %v39
  %v152 = vunpack.c.h.b16 %v39
  %v153 = vunpack.c.l.b16 %v40
  %v154 = vunpack.c.h.b16 %v40
  %v155 = vunpack.c.l.b16 %v41
  %v156 = vunpack.c.h.b16 %v41
  %v157 = vunpack.c.l.b16 %v42
  %v158 = vunpack.c.h.b16 %v42
  %v159 = vunpack.c.l.b16 %v43
  %v160 = vunpack.c.h.b16 %v43
  %v161 = vunpack.c.l.b16 %v44
  %v162 = vunpack.c.h.b16 %v44
  %v163 = vunpack.c.l.b16 %v45
  %v164 = vunpack.c.h.b16 %v45
  %v165 = vunpack.c.l.b16 %v46
  %v166 = vunpack.c.h.b16 %v46
  %v167 = vpack.c.b16 %v105, %v103
  %v168 = vpack.c.b16 %v106, %v104
  %v169 = vpack.c.b16 %v109, %v107
  %v170 = vpack.c.b16 %v110, %v108
  %v171 = vpack.c.b16 %v113, %v111
  %v172 = vpack.c.b16 %v114, %v112
  %v173 = vpack.c.b16 %v117, %v115
  %v174 = vpack.c.b16 %v118, %v116
  %v175 = vpack.c.b16 %v121, %v119
  %v176 = vpack.c.b16 %v122, %v120
  %v177 = vpack.c.b16 %v125, %v123
  %v178 = vpack.c.b16 %v126, %v124
  %v179 = vpack.c.b16 %v129, %v127
  %v180 = vpack.c.b16 %v130, %v128
  %v181 = vpack.c.b16 %v133, %v131
  %v182 = vpack.c.b16 %v134, %v132
  %v183 = vpack.c.b16 %v137, %v135
  %v184 = vpack.c.b16 %v138, %v136
  %v185 = vpack.c.b16 %v141, %v139
  %v186 = vpack.c.b16 %v142, %v140
  %v187 = vpack.c.b16 %v145, %v143
  %v188 = vpack.c.b16 %v146, %v144
  %v189 = vpack.c.b16 %v149, %v147
  %v190 = vpack.c.b16 %v150, %v148
  %v191 = vpack.c.b16 %v153, %v151
  %v192 = vpack.c.b16 %v154, %v152
  %v193 = vpack.c.b16 %v157, %v155
  %v194 = vpack.c.b16 %v158, %v156
  %v195 = vpack.c.b16 %v161, %v159
  %v196 = vpack.c.b16 %v162, %v160
  %v197 = vpack.c.b16 %v165, %v163
  %v198 = vpack.c.b16 %v166, %v164
  %v235 = vunpack.c.l.b16 %v47
  %v236 = vunpack.c.l.b16 %v48
  %v237 = vunpack.c.l.b16 %v49
  %v238 = vunpack.c.l.b16 %v50
  %v239 = vunpack.c.l.b16 %v51
  %v240 = vunpack.c.l.b16 %v52
  %v241 = vunpack.c.l.b16 %v53
  %v242 = vunpack.c.l.b16 %v54
  %v243 = vunpack.c.l.b16 %v55
  %v244 = vunpack.c.l.b16 %v56
  %v245 = vunpack.c.l.b16 %v57
  %v246 = vunpack.c.l.b16 %v58
  %v247 = vunpack.c.l.b16 %v59
  %v248 = vunpack.c.l.b16 %v60
  %v249 = vunpack.c.l.b16 %v61
  %v250 = vunpack.c.l.b16 %v62
  %v251 = vunpack.c.l.b16 %v63
  %v252 = vunpack.c.l.b16 %v64
  %v253 = vunpack.c.l.b16 %v65
  %v254 = vunpack.c.l.b16 %v66
  %v255 = vpack.c.b16 %v236, %v235
  %v256 = vpack.c.b16 %v238, %v237
  %v257 = vpack.c.b16 %v240, %v239
  %v258 = vpack.c.b16 %v242, %v241
  %v259 = vpack.c.b16 %v244, %v243
  %v260 = vpack.c.b16 %v246, %v245
  %v261 = vpack.c.b16 %v248, %v247
  %v262 = vpack.c.b16 %v250, %v249
  %v263 = vpack.c.b16 %v252, %v251
  %v264 = vpack.c.b16 %v254, %v253
  %vm275 = vcmask 261120
  %v277 = vsel %vm275, %v168, 0
  %v280 = vsel %vm275, %v170, 0
  %v283 = vsel %vm275, %v172, 0
  %v286 = vsel %vm275, %v174, 0
  %v289 = vsel %vm275, %v176, 0
  %v292 = vsel %vm275, %v178, 0
  %v295 = vsel %vm275, %v180, 0
  %v298 = vsel %vm275, %v182, 0
  %v301 = vsel %vm275, %v184, 0
  %v304 = vsel %vm275, %v186, 0
  %v307 = vsel %vm275, %v188, 0
  %v310 = vsel %vm275, %v190, 0
  %v313 = vsel %vm275, %v192, 0
  %v316 = vsel %vm275, %v194, 0
  %v319 = vsel %vm275, %v196, 0
  %v322 = vsel %vm275, %v198, 0
  %324 = vmatpush.bf16.msra.mxu0 %v262
  %325 = vmatpush.bf16.msra.mxu0 %v261
  %326 = vmatpush.bf16.msra.mxu0 %v260
  %327 = vmatpush.bf16.msra.mxu0 %v259
  %328 = vmatpush.bf16.msra.mxu0 %v258
  %329 = vmatpush.bf16.msra.mxu0 %v257
  %330 = vmatpush.bf16.msra.mxu0 %v256
  %331 = vmatpush.bf16.msra.mxu0 %v255
  %332 = vmatmul.bf16.gmra.mxu0 %v167
  %v333 = vpop.f32.mrf.mxu0
  %v334 = vadd.f32 %v69, %v333
  %v335 = vpop.f32.mrf.mxu0
  %v336 = vadd.f32 %v69, %v335
  %337 = vmatmul.bf16.gmra.mxu0 %v169
  %v338 = vpop.f32.mrf.mxu0
  %v339 = vadd.f32 %v69, %v338
  %v340 = vpop.f32.mrf.mxu0
  %v341 = vadd.f32 %v69, %v340
  %342 = vmatmul.bf16.gmra.mxu0 %v171
  %v343 = vpop.f32.mrf.mxu0
  %v344 = vadd.f32 %v69, %v343
  %v345 = vpop.f32.mrf.mxu0
  %v346 = vadd.f32 %v69, %v345
  %347 = vmatmul.bf16.gmra.mxu0 %v173
  %v348 = vpop.f32.mrf.mxu0
  %v349 = vadd.f32 %v69, %v348
  %v350 = vpop.f32.mrf.mxu0
  %v351 = vadd.f32 %v69, %v350
  %352 = vmatmul.bf16.gmra.mxu0 %v175
  %v353 = vpop.f32.mrf.mxu0
  %v354 = vadd.f32 %v69, %v353
  %v355 = vpop.f32.mrf.mxu0
  %v356 = vadd.f32 %v69, %v355
  %357 = vmatmul.bf16.gmra.mxu0 %v177
  %v358 = vpop.f32.mrf.mxu0
  %v359 = vadd.f32 %v69, %v358
  %v360 = vpop.f32.mrf.mxu0
  %v361 = vadd.f32 %v69, %v360
  %362 = vmatmul.bf16.gmra.mxu0 %v179
  %v363 = vpop.f32.mrf.mxu0
  %v364 = vadd.f32 %v69, %v363
  %v365 = vpop.f32.mrf.mxu0
  %v366 = vadd.f32 %v69, %v365
  %367 = vmatmul.bf16.gmra.mxu0 %v181
  %v368 = vpop.f32.mrf.mxu0
  %v369 = vadd.f32 %v69, %v368
  %v370 = vpop.f32.mrf.mxu0
  %v371 = vadd.f32 %v69, %v370
  %372 = vmatmul.bf16.gmra.mxu0 %v183
  %v373 = vpop.f32.mrf.mxu0
  %v374 = vadd.f32 %v69, %v373
  %v375 = vpop.f32.mrf.mxu0
  %v376 = vadd.f32 %v69, %v375
  %377 = vmatmul.bf16.gmra.mxu0 %v185
  %v378 = vpop.f32.mrf.mxu0
  %v379 = vadd.f32 %v69, %v378
  %v380 = vpop.f32.mrf.mxu0
  %v381 = vadd.f32 %v69, %v380
  %382 = vmatmul.bf16.gmra.mxu0 %v187
  %v383 = vpop.f32.mrf.mxu0
  %v384 = vadd.f32 %v69, %v383
  %v385 = vpop.f32.mrf.mxu0
  %v386 = vadd.f32 %v69, %v385
  %387 = vmatmul.bf16.gmra.mxu0 %v189
  %v388 = vpop.f32.mrf.mxu0
  %v389 = vadd.f32 %v69, %v388
  %v390 = vpop.f32.mrf.mxu0
  %v391 = vadd.f32 %v69, %v390
  %392 = vmatmul.bf16.gmra.mxu0 %v191
  %v393 = vpop.f32.mrf.mxu0
  %v394 = vadd.f32 %v69, %v393
  %v395 = vpop.f32.mrf.mxu0
  %v396 = vadd.f32 %v69, %v395
  %397 = vmatmul.bf16.gmra.mxu0 %v193
  %v398 = vpop.f32.mrf.mxu0
  %v399 = vadd.f32 %v69, %v398
  %v400 = vpop.f32.mrf.mxu0
  %v401 = vadd.f32 %v69, %v400
  %402 = vmatmul.bf16.gmra.mxu0 %v195
  %v403 = vpop.f32.mrf.mxu0
  %v404 = vadd.f32 %v69, %v403
  %v405 = vpop.f32.mrf.mxu0
  %v406 = vadd.f32 %v69, %v405
  %407 = vmatmul.bf16.gmra.mxu0 %v197
  %v408 = vpop.f32.mrf.mxu0
  %v409 = vadd.f32 %v69, %v408
  %v410 = vpop.f32.mrf.mxu0
  %v411 = vadd.f32 %v69, %v410
  %412 = vdwg.mxu0
  %413 = vmatpush.bf16.msra.mxu0 0
  %414 = vmatpush.bf16.msra.mxu0 0
  %415 = vmatpush.bf16.msra.mxu0 0
  %416 = vmatpush.bf16.msra.mxu0 0
  %417 = vmatpush.bf16.msra.mxu0 0
  %418 = vmatpush.bf16.msra.mxu0 0
  %419 = vmatpush.bf16.msra.mxu0 %v264
  %420 = vmatpush.bf16.msra.mxu0 %v263
  %421 = vmatmul.bf16.gmra.mxu0 %v277
  %v422 = vpop.f32.mrf.mxu0
  %v423 = vadd.f32 %v334, %v422
  %v424 = vpop.f32.mrf.mxu0
  %v425 = vadd.f32 %v336, %v424
  %426 = vmatmul.bf16.gmra.mxu0 %v280
  %v427 = vpop.f32.mrf.mxu0
  %v428 = vadd.f32 %v339, %v427
  %v429 = vpop.f32.mrf.mxu0
  %v430 = vadd.f32 %v341, %v429
  %431 = vmatmul.bf16.gmra.mxu0 %v283
  %v432 = vpop.f32.mrf.mxu0
  %v433 = vadd.f32 %v344, %v432
  %v434 = vpop.f32.mrf.mxu0
  %v435 = vadd.f32 %v346, %v434
  %436 = vmatmul.bf16.gmra.mxu0 %v286
  %v437 = vpop.f32.mrf.mxu0
  %v438 = vadd.f32 %v349, %v437
  %v439 = vpop.f32.mrf.mxu0
  %v440 = vadd.f32 %v351, %v439
  %441 = vmatmul.bf16.gmra.mxu0 %v289
  %v442 = vpop.f32.mrf.mxu0
  %v443 = vadd.f32 %v354, %v442
  %v444 = vpop.f32.mrf.mxu0
  %v445 = vadd.f32 %v356, %v444
  %446 = vmatmul.bf16.gmra.mxu0 %v292
  %v447 = vpop.f32.mrf.mxu0
  %v448 = vadd.f32 %v359, %v447
  %v449 = vpop.f32.mrf.mxu0
  %v450 = vadd.f32 %v361, %v449
  %451 = vmatmul.bf16.gmra.mxu0 %v295
  %v452 = vpop.f32.mrf.mxu0
  %v453 = vadd.f32 %v364, %v452
  %v454 = vpop.f32.mrf.mxu0
  %v455 = vadd.f32 %v366, %v454
  %456 = vmatmul.bf16.gmra.mxu0 %v298
  %v457 = vpop.f32.mrf.mxu0
  %v458 = vadd.f32 %v369, %v457
  %v459 = vpop.f32.mrf.mxu0
  %v460 = vadd.f32 %v371, %v459
  %461 = vmatmul.bf16.gmra.mxu0 %v301
  %v462 = vpop.f32.mrf.mxu0
  %v463 = vadd.f32 %v374, %v462
  %v464 = vpop.f32.mrf.mxu0
  %v465 = vadd.f32 %v376, %v464
  %466 = vmatmul.bf16.gmra.mxu0 %v304
  %v467 = vpop.f32.mrf.mxu0
  %v468 = vadd.f32 %v379, %v467
  %v469 = vpop.f32.mrf.mxu0
  %v470 = vadd.f32 %v381, %v469
  %471 = vmatmul.bf16.gmra.mxu0 %v307
  %v472 = vpop.f32.mrf.mxu0
  %v473 = vadd.f32 %v384, %v472
  %v474 = vpop.f32.mrf.mxu0
  %v475 = vadd.f32 %v386, %v474
  %476 = vmatmul.bf16.gmra.mxu0 %v310
  %v477 = vpop.f32.mrf.mxu0
  %v478 = vadd.f32 %v389, %v477
  %v479 = vpop.f32.mrf.mxu0
  %v480 = vadd.f32 %v391, %v479
  %481 = vmatmul.bf16.gmra.mxu0 %v313
  %v482 = vpop.f32.mrf.mxu0
  %v483 = vadd.f32 %v394, %v482
  %v484 = vpop.f32.mrf.mxu0
  %v485 = vadd.f32 %v396, %v484
  %486 = vmatmul.bf16.gmra.mxu0 %v316
  %v487 = vpop.f32.mrf.mxu0
  %v488 = vadd.f32 %v399, %v487
  %v489 = vpop.f32.mrf.mxu0
  %v490 = vadd.f32 %v401, %v489
  %491 = vmatmul.bf16.gmra.mxu0 %v319
  %v492 = vpop.f32.mrf.mxu0
  %v493 = vadd.f32 %v404, %v492
  %v494 = vpop.f32.mrf.mxu0
  %v495 = vadd.f32 %v406, %v494
  %496 = vmatmul.bf16.gmra.mxu0 %v322
  %v497 = vpop.f32.mrf.mxu0
  %v498 = vadd.f32 %v409, %v497
  %v499 = vpop.f32.mrf.mxu0
  %v500 = vadd.f32 %v411, %v499
  %501 = vdwg.mxu0
  %v502 = vmax.f32 %v423, 0.0
  %v503 = vmax.f32 %v425, 0.0
  %v504 = vmax.f32 %v428, 0.0
  %v505 = vmax.f32 %v430, 0.0
  %v506 = vmax.f32 %v433, 0.0
  %v507 = vmax.f32 %v435, 0.0
  %v508 = vmax.f32 %v438, 0.0
  %v509 = vmax.f32 %v440, 0.0
  %v510 = vmax.f32 %v443, 0.0
  %v511 = vmax.f32 %v445, 0.0
  %v512 = vmax.f32 %v448, 0.0
  %v513 = vmax.f32 %v450, 0.0
  %v514 = vmax.f32 %v453, 0.0
  %v515 = vmax.f32 %v455, 0.0
  %v516 = vmax.f32 %v458, 0.0
  %v517 = vmax.f32 %v460, 0.0
  %v518 = vmax.f32 %v463, 0.0
  %v519 = vmax.f32 %v465, 0.0
  %v520 = vmax.f32 %v468, 0.0
  %v521 = vmax.f32 %v470, 0.0
  %v522 = vmax.f32 %v473, 0.0
  %v523 = vmax.f32 %v475, 0.0
  %v524 = vmax.f32 %v478, 0.0
  %v525 = vmax.f32 %v480, 0.0
  %v526 = vmax.f32 %v483, 0.0
  %v527 = vmax.f32 %v485, 0.0
  %v528 = vmax.f32 %v488, 0.0
  %v529 = vmax.f32 %v490, 0.0
  %v530 = vmax.f32 %v493, 0.0
  %v531 = vmax.f32 %v495, 0.0
  %v532 = vmax.f32 %v498, 0.0
  %v533 = vmax.f32 %v500, 0.0
  %v534 = vmax.f32 %v502, %v510
  %v535 = vmax.f32 %v503, %v511
  %v536 = vmax.f32 %v504, %v512
  %v537 = vmax.f32 %v505, %v513
  %v538 = vmax.f32 %v506, %v514
  %v539 = vmax.f32 %v507, %v515
  %v540 = vmax.f32 %v508, %v516
  %v541 = vmax.f32 %v509, %v517
  %v542 = vmax.f32 %v518, %v526
  %v543 = vmax.f32 %v519, %v527
  %v544 = vmax.f32 %v520, %v528
  %v545 = vmax.f32 %v521, %v529
  %v546 = vmax.f32 %v522, %v530
  %v547 = vmax.f32 %v523, %v531
  %v548 = vmax.f32 %v524, %v532
  %v549 = vmax.f32 %v525, %v533
  %v550 = vmax.f32 %v534, %v542
  %v551 = vmax.f32 %v535, %v543
  %v552 = vmax.f32 %v536, %v544
  %v553 = vmax.f32 %v537, %v545
  %v554 = vmax.f32 %v538, %v546
  %v555 = vmax.f32 %v539, %v547
  %v556 = vmax.f32 %v540, %v548
  %v557 = vmax.f32 %v541, %v549
  %v558 = vpack.c.bf16 %v550, %v550
  %v559 = vpack.c.bf16 %v551, %v551
  %v560 = vpack.c.bf16 %v552, %v552
  %v561 = vpack.c.bf16 %v553, %v553
  %v562 = vpack.c.bf16 %v554, %v554
  %v563 = vpack.c.bf16 %v555, %v555
  %v564 = vpack.c.bf16 %v556, %v556
  %v565 = vpack.c.bf16 %v557, %v557
  %566 = vst [vmem:[%s3] sm:$0xf] %v558
  %567 = vst [vmem:[%s3 + $0x4] sm:$0xf] %v559
  %568 = vst [vmem:[%s3 + $0x8] sm:$0xf] %v560
  %569 = vst [vmem:[%s3 + $0xc] sm:$0xf] %v561
  %570 = vst [vmem:[%s3 + $0x10] sm:$0xf] %v562
  %571 = vst [vmem:[%s3 + $0x14] sm:$0xf] %v563
  %572 = vst [vmem:[%s3 + $0x18] sm:$0xf] %v564
  %573 = vst [vmem:[%s3 + $0x1c] sm:$0xf] %v565
  // Predicated region
  $region14: #{net_forward.4} parent=0 // pred_check
    _
  $region15: #{net_forward.4} parent=0 // pred_check_branch
    %575 = sbr.rel (0) target = $region17
  $region16: #{net_forward.4} parent=0 // pred_region
    _
  $region17: #{net_forward.4} parent=0 // pred_fallthru
    _
  // Predicated region
  $region18: #{net_forward.4} parent=0 // pred_check
    _
  $region19: #{net_forward.4} parent=0 // pred_check_branch
    %577 = sbr.rel (0) target = $region21
  $region20: #{net_forward.4} parent=0 // pred_region
    _
  $region21: #{net_forward.4} parent=0 // pred_fallthru
    _

// kernel: net_forward.5
$region0: #{net_forward.5}
  #allocation0 [shape = 'u32[]', space=smem, size = 0x4, offset = 0x4, fixed_abs, tag = 'smem constant byte address 0x4 - core index']
  #allocation1 [shape = 'u32[72,128]{1,0:T(1,128)}', space=vmem, size = 0x9000, scoped, tag = 'internal scratch']
  %s0 = inlined_call_operand.vmem [shape: bf16[16,512], index: 0, kind: input, shape index: {}]
  %s1 = inlined_call_operand.vmem [shape: bf16[512,128], index: 1, kind: input, shape index: {}]
  %s2 = inlined_call_operand.vmem [shape: f32[1,128], index: 2, kind: input, shape index: {}]
  %s3 = inlined_call_operand.vmem [shape: bf16[128,128], index: 3, kind: input, shape index: {}]
  %s4 = inlined_call_operand.vmem [shape: f32[1,128], index: 4, kind: input, shape index: {}]
  %s5 = inlined_call_operand.vmem [shape: f32[16,128], index: 5, kind: output, shape index: {}]
  %s6 = sld [smem:[#allocation0]]
  $region30: #{net_forward.5} parent=0
    _
  %s8 = ssub.s32 1, %s6
  %s9 = scalar_select 0, %s8, %s6
  // Predicated region
  $region2: #{net_forward.5} parent=0 // pred_check
    _
  $region3: #{net_forward.5} parent=0 // pred_check_branch
    %11 = sbr.rel (0) target = $region5
  $region4: #{net_forward.5} parent=0 // pred_region
    _
  $region5: #{net_forward.5} parent=0 // pred_fallthru
    _
  // Predicated region
  $region6: #{net_forward.5} parent=0 // pred_check
    _
  $region7: #{net_forward.5} parent=0 // pred_check_branch
    %13 = sbr.rel (0) target = $region9
  $region8: #{net_forward.5} parent=0 // pred_region
    _
  $region9: #{net_forward.5} parent=0 // pred_fallthru
    _
  // Predicated region
  $region10: #{net_forward.5} parent=0 // pred_check
    _
  $region11: #{net_forward.5} parent=0 // pred_check_branch
    %15 = sbr.rel (0) target = $region13
  $region12: #{net_forward.5} parent=0 // pred_region
    _
  $region13: #{net_forward.5} parent=0 // pred_fallthru
    _
  // Predicated region
  $region14: #{net_forward.5} parent=0 // pred_check
    _
  $region15: #{net_forward.5} parent=0 // pred_check_branch
    %17 = sbr.rel (0) target = $region17
  $region16: #{net_forward.5} parent=0 // pred_region
    _
  $region17: #{net_forward.5} parent=0 // pred_fallthru
    _
  // Predicated region
  $region18: #{net_forward.5} parent=0 // pred_check
    _
  $region19: #{net_forward.5} parent=0 // pred_check_branch
    %19 = sbr.rel (0) target = $region21
  $region20: #{net_forward.5} parent=0 // pred_region
    _
  $region21: #{net_forward.5} parent=0 // pred_fallthru
    _
  %v20 = vld [vmem:[%s0] sm:$0xff]
  %v21 = vld [vmem:[%s0 + $0x8] sm:$0xff]
  %v22 = vld [vmem:[%s0 + $0x10] sm:$0xff]
  %v23 = vld [vmem:[%s0 + $0x18] sm:$0xff]
  %v24 = vld [vmem:[%s1] sm:$0xf]
  %v25 = vld [vmem:[%s1 + $0x4] sm:$0xf]
  %v26 = vld [vmem:[%s1 + $0x8] sm:$0xf]
  %v27 = vld [vmem:[%s1 + $0xc] sm:$0xf]
  %v28 = vld [vmem:[%s1 + $0x10] sm:$0xf]
  %v29 = vld [vmem:[%s1 + $0x14] sm:$0xf]
  %v30 = vld [vmem:[%s1 + $0x18] sm:$0xf]
  %v31 = vld [vmem:[%s1 + $0x1c] sm:$0xf]
  %v32 = vld [vmem:[%s1 + $0x20] sm:$0xf]
  %v33 = vld [vmem:[%s1 + $0x24] sm:$0xf]
  %v34 = vld [vmem:[%s1 + $0x28] sm:$0xf]
  %v35 = vld [vmem:[%s1 + $0x2c] sm:$0xf]
  %v36 = vld [vmem:[%s1 + $0x30] sm:$0xf]
  %v37 = vld [vmem:[%s1 + $0x34] sm:$0xf]
  %v38 = vld [vmem:[%s1 + $0x38] sm:$0xf]
  %v39 = vld [vmem:[%s1 + $0x3c] sm:$0xf]
  %v40 = vld [vmem:[%s1 + $0x40] sm:$0xf]
  %v41 = vld [vmem:[%s1 + $0x44] sm:$0xf]
  %v42 = vld [vmem:[%s1 + $0x48] sm:$0xf]
  %v43 = vld [vmem:[%s1 + $0x4c] sm:$0xf]
  %v44 = vld [vmem:[%s1 + $0x50] sm:$0xf]
  %v45 = vld [vmem:[%s1 + $0x54] sm:$0xf]
  %v46 = vld [vmem:[%s1 + $0x58] sm:$0xf]
  %v47 = vld [vmem:[%s1 + $0x5c] sm:$0xf]
  %v48 = vld [vmem:[%s1 + $0x60] sm:$0xf]
  %v49 = vld [vmem:[%s1 + $0x64] sm:$0xf]
  %v50 = vld [vmem:[%s1 + $0x68] sm:$0xf]
  %v51 = vld [vmem:[%s1 + $0x6c] sm:$0xf]
  %v52 = vld [vmem:[%s1 + $0x70] sm:$0xf]
  %v53 = vld [vmem:[%s1 + $0x74] sm:$0xf]
  %v54 = vld [vmem:[%s1 + $0x78] sm:$0xf]
  %v55 = vld [vmem:[%s1 + $0x7c] sm:$0xf]
  %v56 = vld [vmem:[%s1 + $0x80] sm:$0xf]
  %v57 = vld [vmem:[%s1 + $0x84] sm:$0xf]
  %v58 = vld [vmem:[%s1 + $0x88] sm:$0xf]
  %v59 = vld [vmem:[%s1 + $0x8c] sm:$0xf]
  %v60 = vld [vmem:[%s1 + $0x90] sm:$0xf]
  %v61 = vld [vmem:[%s1 + $0x94] sm:$0xf]
  %v62 = vld [vmem:[%s1 + $0x98] sm:$0xf]
  %v63 = vld [vmem:[%s1 + $0x9c] sm:$0xf]
  %v64 = vld [vmem:[%s1 + $0xa0] sm:$0xf]
  %v65 = vld [vmem:[%s1 + $0xa4] sm:$0xf]
  %v66 = vld [vmem:[%s1 + $0xa8] sm:$0xf]
  %v67 = vld [vmem:[%s1 + $0xac] sm:$0xf]
  %v68 = vld [vmem:[%s1 + $0xb0] sm:$0xf]
  %v69 = vld [vmem:[%s1 + $0xb4] sm:$0xf]
  %v70 = vld [vmem:[%s1 + $0xb8] sm:$0xf]
  %v71 = vld [vmem:[%s1 + $0xbc] sm:$0xf]
  %v72 = vld [vmem:[%s1 + $0xc0] sm:$0xf]
  %v73 = vld [vmem:[%s1 + $0xc4] sm:$0xf]
  %v74 = vld [vmem:[%s1 + $0xc8] sm:$0xf]
  %v75 = vld [vmem:[%s1 + $0xcc] sm:$0xf]
  %v76 = vld [vmem:[%s1 + $0xd0] sm:$0xf]
  %v77 = vld [vmem:[%s1 + $0xd4] sm:$0xf]
  %v78 = vld [vmem:[%s1 + $0xd8] sm:$0xf]
  %v79 = vld [vmem:[%s1 + $0xdc] sm:$0xf]
  %v80 = vld [vmem:[%s1 + $0xe0] sm:$0xf]
  %v81 = vld [vmem:[%s1 + $0xe4] sm:$0xf]
  %v82 = vld [vmem:[%s1 + $0xe8] sm:$0xf]
  %v83 = vld [vmem:[%s1 + $0xec] sm:$0xf]
  %v84 = vld [vmem:[%s1 + $0xf0] sm:$0xf]
  %v85 = vld [vmem:[%s1 + $0xf4] sm:$0xf]
  %v86 = vld [vmem:[%s1 + $0xf8] sm:$0xf]
  %v87 = vld [vmem:[%s1 + $0xfc] sm:$0xf]
  %v88 = vld [vmem:[%s2] sm:$0x1]
  %v90 = vperm.slane %v88, 0
  %v96 = vunpack.c.l.b16 %v20
  %v97 = vunpack.c.h.b16 %v20
  %v98 = vunpack.c.l.b16 %v21
  %v99 = vunpack.c.h.b16 %v21
  %v100 = vunpack.c.l.b16 %v22
  %v101 = vunpack.c.h.b16 %v22
  %v102 = vunpack.c.l.b16 %v23
  %v103 = vunpack.c.h.b16 %v23
  %v104 = vpack.c.b16 %v100, %v96
  %v105 = vpack.c.b16 %v101, %v97
  %v106 = vpack.c.b16 %v102, %v98
  %v107 = vpack.c.b16 %v103, %v99
  %v176 = vunpack.c.l.b16 %v24
  %v177 = vunpack.c.l.b16 %v25
  %v178 = vunpack.c.l.b16 %v26
  %v179 = vunpack.c.l.b16 %v27
  %v180 = vunpack.c.l.b16 %v28
  %v181 = vunpack.c.l.b16 %v29
  %v182 = vunpack.c.l.b16 %v30
  %v183 = vunpack.c.l.b16 %v31
  %v184 = vunpack.c.l.b16 %v32
  %v185 = vunpack.c.l.b16 %v33
  %v186 = vunpack.c.l.b16 %v34
  %v187 = vunpack.c.l.b16 %v35
  %v188 = vunpack.c.l.b16 %v36
  %v189 = vunpack.c.l.b16 %v37
  %v190 = vunpack.c.l.b16 %v38
  %v191 = vunpack.c.l.b16 %v39
  %v192 = vunpack.c.l.b16 %v40
  %v193 = vunpack.c.l.b16 %v41
  %v194 = vunpack.c.l.b16 %v42
  %v195 = vunpack.c.l.b16 %v43
  %v196 = vunpack.c.l.b16 %v44
  %v197 = vunpack.c.l.b16 %v45
  %v198 = vunpack.c.l.b16 %v46
  %v199 = vunpack.c.l.b16 %v47
  %v200 = vunpack.c.l.b16 %v48
  %v201 = vunpack.c.l.b16 %v49
  %v202 = vunpack.c.l.b16 %v50
  %v203 = vunpack.c.l.b16 %v51
  %v204 = vunpack.c.l.b16 %v52
  %v205 = vunpack.c.l.b16 %v53
  %v206 = vunpack.c.l.b16 %v54
  %v207 = vunpack.c.l.b16 %v55
  %v208 = vunpack.c.l.b16 %v56
  %v209 = vunpack.c.l.b16 %v57
  %v210 = vunpack.c.l.b16 %v58
  %v211 = vunpack.c.l.b16 %v59
  %v212 = vunpack.c.l.b16 %v60
  %v213 = vunpack.c.l.b16 %v61
  %v214 = vunpack.c.l.b16 %v62
  %v215 = vunpack.c.l.b16 %v63
  %v216 = vunpack.c.l.b16 %v64
  %v217 = vunpack.c.l.b16 %v65
  %v218 = vunpack.c.l.b16 %v66
  %v219 = vunpack.c.l.b16 %v67
  %v220 = vunpack.c.l.b16 %v68
  %v221 = vunpack.c.l.b16 %v69
  %v222 = vunpack.c.l.b16 %v70
  %v223 = vunpack.c.l.b16 %v71
  %v224 = vunpack.c.l.b16 %v72
  %v225 = vunpack.c.l.b16 %v73
  %v226 = vunpack.c.l.b16 %v74
  %v227 = vunpack.c.l.b16 %v75
  %v228 = vunpack.c.l.b16 %v76
  %v229 = vunpack.c.l.b16 %v77
  %v230 = vunpack.c.l.b16 %v78
  %v231 = vunpack.c.l.b16 %v79
  %v232 = vunpack.c.l.b16 %v80
  %v233 = vunpack.c.l.b16 %v81
  %v234 = vunpack.c.l.b16 %v82
  %v235 = vunpack.c.l.b16 %v83
  %v236 = vunpack.c.l.b16 %v84
  %v237 = vunpack.c.l.b16 %v85
  %v238 = vunpack.c.l.b16 %v86
  %v239 = vunpack.c.l.b16 %v87
  %v240 = vpack.c.b16 %v177, %v176
  %v241 = vpack.c.b16 %v179, %v178
  %v242 = vpack.c.b16 %v181, %v180
  %v243 = vpack.c.b16 %v183, %v182
  %v244 = vpack.c.b16 %v185, %v184
  %v245 = vpack.c.b16 %v187, %v186
  %v246 = vpack.c.b16 %v189, %v188
  %v247 = vpack.c.b16 %v191, %v190
  %v248 = vpack.c.b16 %v193, %v192
  %v249 = vpack.c.b16 %v195, %v194
  %v250 = vpack.c.b16 %v197, %v196
  %v251 = vpack.c.b16 %v199, %v198
  %v252 = vpack.c.b16 %v201, %v200
  %v253 = vpack.c.b16 %v203, %v202
  %v254 = vpack.c.b16 %v205, %v204
  %v255 = vpack.c.b16 %v207, %v206
  %v256 = vpack.c.b16 %v209, %v208
  %v257 = vpack.c.b16 %v211, %v210
  %v258 = vpack.c.b16 %v213, %v212
  %v259 = vpack.c.b16 %v215, %v214
  %v260 = vpack.c.b16 %v217, %v216
  %v261 = vpack.c.b16 %v219, %v218
  %v262 = vpack.c.b16 %v221, %v220
  %v263 = vpack.c.b16 %v223, %v222
  %v264 = vpack.c.b16 %v225, %v224
  %v265 = vpack.c.b16 %v227, %v226
  %v266 = vpack.c.b16 %v229, %v228
  %v267 = vpack.c.b16 %v231, %v230
  %v268 = vpack.c.b16 %v233, %v232
  %v269 = vpack.c.b16 %v235, %v234
  %v270 = vpack.c.b16 %v237, %v236
  %v271 = vpack.c.b16 %v239, %v238
  %304 = vmatpush.bf16.msra.mxu0 %v247
  %305 = vmatpush.bf16.msra.mxu0 %v246
  %306 = vmatpush.bf16.msra.mxu0 %v245
  %307 = vmatpush.bf16.msra.mxu0 %v244
  %308 = vmatpush.bf16.msra.mxu0 %v243
  %309 = vmatpush.bf16.msra.mxu0 %v242
  %310 = vmatpush.bf16.msra.mxu0 %v241
  %311 = vmatpush.bf16.msra.mxu0 %v240
  %312 = vmatmul.bf16.gmra.mxu0 %v104
  %v313 = vpop.f32.mrf.mxu0
  %v314 = vadd.f32 %v90, %v313
  %v315 = vpop.f32.mrf.mxu0
  %v316 = vadd.f32 %v90, %v315
  %317 = vdwg.mxu0
  %318 = vmatpush.bf16.msra.mxu0 %v255
  %319 = vmatpush.bf16.msra.mxu0 %v254
  %320 = vmatpush.bf16.msra.mxu0 %v253
  %321 = vmatpush.bf16.msra.mxu0 %v252
  %322 = vmatpush.bf16.msra.mxu0 %v251
  %323 = vmatpush.bf16.msra.mxu0 %v250
  %324 = vmatpush.bf16.msra.mxu0 %v249
  %325 = vmatpush.bf16.msra.mxu0 %v248
  %326 = vmatmul.bf16.gmra.mxu0 %v105
  %v327 = vpop.f32.mrf.mxu0
  %v328 = vadd.f32 %v314, %v327
  %v329 = vpop.f32.mrf.mxu0
  %v330 = vadd.f32 %v316, %v329
  %331 = vdwg.mxu0
  %332 = vmatpush.bf16.msra.mxu0 %v263
  %333 = vmatpush.bf16.msra.mxu0 %v262
  %334 = vmatpush.bf16.msra.mxu0 %v261
  %335 = vmatpush.bf16.msra.mxu0 %v260
  %336 = vmatpush.bf16.msra.mxu0 %v259
  %337 = vmatpush.bf16.msra.mxu0 %v258
  %338 = vmatpush.bf16.msra.mxu0 %v257
  %339 = vmatpush.bf16.msra.mxu0 %v256
  %340 = vmatmul.bf16.gmra.mxu0 %v106
  %v341 = vpop.f32.mrf.mxu0
  %v342 = vadd.f32 %v328, %v341
  %v343 = vpop.f32.mrf.mxu0
  %v344 = vadd.f32 %v330, %v343
  %345 = vdwg.mxu0
  %346 = vmatpush.bf16.msra.mxu0 %v271
  %347 = vmatpush.bf16.msra.mxu0 %v270
  %348 = vmatpush.bf16.msra.mxu0 %v269
  %349 = vmatpush.bf16.msra.mxu0 %v268
  %350 = vmatpush.bf16.msra.mxu0 %v267
  %351 = vmatpush.bf16.msra.mxu0 %v266
  %352 = vmatpush.bf16.msra.mxu0 %v265
  %353 = vmatpush.bf16.msra.mxu0 %v264
  %354 = vmatmul.bf16.gmra.mxu0 %v107
  %v355 = vpop.f32.mrf.mxu0
  %v356 = vadd.f32 %v342, %v355
  %v357 = vpop.f32.mrf.mxu0
  %v358 = vadd.f32 %v344, %v357
  %359 = vdwg.mxu0
  %v360 = vmax.f32 %v356, 0.0
  %v361 = vmax.f32 %v358, 0.0
  %v362 = vpack.c.bf16 %v361, %v360
  %v363 = vld [vmem:[%s3] sm:$0xf]
  %v364 = vld [vmem:[%s3 + $0x4] sm:$0xf]
  %v365 = vld [vmem:[%s3 + $0x8] sm:$0xf]
  %v366 = vld [vmem:[%s3 + $0xc] sm:$0xf]
  %v367 = vld [vmem:[%s3 + $0x10] sm:$0xf]
  %v368 = vld [vmem:[%s3 + $0x14] sm:$0xf]
  %v369 = vld [vmem:[%s3 + $0x18] sm:$0xf]
  %v370 = vld [vmem:[%s3 + $0x1c] sm:$0xf]
  %v371 = vld [vmem:[%s3 + $0x20] sm:$0xf]
  %v372 = vld [vmem:[%s3 + $0x24] sm:$0xf]
  %v373 = vld [vmem:[%s3 + $0x28] sm:$0xf]
  %v374 = vld [vmem:[%s3 + $0x2c] sm:$0xf]
  %v375 = vld [vmem:[%s3 + $0x30] sm:$0xf]
  %v376 = vld [vmem:[%s3 + $0x34] sm:$0xf]
  %v377 = vld [vmem:[%s3 + $0x38] sm:$0xf]
  %v378 = vld [vmem:[%s3 + $0x3c] sm:$0xf]
  %v379 = vld [vmem:[%s4] sm:$0x1]
  %v381 = vperm.slane %v379, 0
  %v399 = vunpack.c.l.b16 %v363
  %v400 = vunpack.c.l.b16 %v364
  %v401 = vunpack.c.l.b16 %v365
  %v402 = vunpack.c.l.b16 %v366
  %v403 = vunpack.c.l.b16 %v367
  %v404 = vunpack.c.l.b16 %v368
  %v405 = vunpack.c.l.b16 %v369
  %v406 = vunpack.c.l.b16 %v370
  %v407 = vunpack.c.l.b16 %v371
  %v408 = vunpack.c.l.b16 %v372
  %v409 = vunpack.c.l.b16 %v373
  %v410 = vunpack.c.l.b16 %v374
  %v411 = vunpack.c.l.b16 %v375
  %v412 = vunpack.c.l.b16 %v376
  %v413 = vunpack.c.l.b16 %v377
  %v414 = vunpack.c.l.b16 %v378
  %v415 = vpack.c.b16 %v400, %v399
  %v416 = vpack.c.b16 %v402, %v401
  %v417 = vpack.c.b16 %v404, %v403
  %v418 = vpack.c.b16 %v406, %v405
  %v419 = vpack.c.b16 %v408, %v407
  %v420 = vpack.c.b16 %v410, %v409
  %v421 = vpack.c.b16 %v412, %v411
  %v422 = vpack.c.b16 %v414, %v413
  %431 = vmatpush.bf16.msra.mxu0 %v422
  %432 = vmatpush.bf16.msra.mxu0 %v421
  %433 = vmatpush.bf16.msra.mxu0 %v420
  %434 = vmatpush.bf16.msra.mxu0 %v419
  %435 = vmatpush.bf16.msra.mxu0 %v418
  %436 = vmatpush.bf16.msra.mxu0 %v417
  %437 = vmatpush.bf16.msra.mxu0 %v416
  %438 = vmatpush.bf16.msra.mxu0 %v415
  %439 = vmatmul.bf16.gmra.mxu0 %v362
  %v440 = vpop.f32.mrf.mxu0
  %v441 = vadd.f32 %v381, %v440
  %v442 = vpop.f32.mrf.mxu0
  %v443 = vadd.f32 %v381, %v442
  %444 = vdwg.mxu0
  %445 = vst [vmem:[%s5] sm:$0xff] %v441
  %446 = vst [vmem:[%s5 + $0x8] sm:$0xff] %v443
  // Predicated region
  $region22: #{net_forward.5} parent=0 // pred_check
    _
  $region23: #{net_forward.5} parent=0 // pred_check_branch
    %448 = sbr.rel (0) target = $region25
  $region24: #{net_forward.5} parent=0 // pred_region
    _
  $region25: #{net_forward.5} parent=0 // pred_fallthru
    _
  // Predicated region
  $region26: #{net_forward.5} parent=0 // pred_check
    _
  $region27: #{net_forward.5} parent=0 // pred_check_branch
    %450 = sbr.rel (0) target = $region29
  $region28: #{net_forward.5} parent=0 // pred_region
    _
  $region29: #{net_forward.5} parent=0 // pred_fallthru
    _

</llo_original>
